<compile_context>
chip_gen: v7x
topology: tpu7x:2x2x1
jax: 0.10.0
libtpu: 0.0.40
codegen_flags: <defaults>
</compile_context>

<pallas_src>
import functools

import numpy as np

import jax
import jax.numpy as jnp
from jax import lax
from jax.experimental import pallas as pl
from jax.experimental.pallas import tpu as pltpu


# ----------------------------- config ---------------------------------------
class Cfg:
    embed_dim = 32
    num_heads = 4
    seq_len = 8
    attention_dropout = 0.0   # eval semantics -> identity
    residual_dropout = 0.0    # eval semantics -> identity


# --------------------------- fused Pallas kernel -----------------------------
def _attention_kernel(x_ref, wqkv_ref, bqkv_ref, wproj_ref, bproj_ref, o_ref,
                      *, batch, seq, n_heads, scale):
    """Entire Attention.forward for the whole batch, fully fused, one step.

    x_ref     : (B*T, E)   input activations (rows stacked over batch)
    wqkv_ref  : (E, 3E)    QKV weight        bqkv_ref : (1, 3E) QKV bias
    wproj_ref : (E, E)     out-proj weight   bproj_ref: (1, E)  out-proj bias
    o_ref     : (B*T, E)   output
    """
    B, T, H = batch, seq, n_heads
    E = x_ref.shape[-1]
    Dh = E // H

    x = x_ref[...]                                       # (B*T, E)

    # ---- QKV projection: ONE (B*T, E) @ (E, 3E) MXU matmul ------------------
    qkv = jnp.dot(x, wqkv_ref[...], preferred_element_type=jnp.float32)
    qkv = qkv + bqkv_ref[...]
    q = qkv[:, 0 * E:1 * E] * scale                      # fold softmax scale once
    k = qkv[:, 1 * E:2 * E]
    v = qkv[:, 2 * E:3 * E]

    # ---- per-(batch, head) score matmuls: independent MXU pushes ------------
    # q @ k^T via dot_general contraction dims (no explicit transpose).
    score_blocks = []
    for b in range(B):                                   # static, unrolled
        r0 = b * T
        for h in range(H):
            c0 = h * Dh
            qh = q[r0:r0 + T, c0:c0 + Dh]                # (T, Dh)
            kh = k[r0:r0 + T, c0:c0 + Dh]
            score_blocks.append(
                lax.dot_general(qh, kh, (((1,), (1,)), ((), ())),
                                preferred_element_type=jnp.float32))  # (T, T)
    s = jnp.concatenate(score_blocks, axis=0)            # (B*H*T, T)

    # ---- ONE additive causal bias + ONE stacked softmax ---------------------
    rows = lax.broadcasted_iota(jnp.int32, s.shape, 0) % T   # query index
    cols = lax.broadcasted_iota(jnp.int32, s.shape, 1)       # key index
    s = s + jnp.where(cols <= rows, 0.0, -1e30).astype(jnp.float32)
    m = jnp.max(s, axis=-1, keepdims=True)               # one XLU reduce
    p = jnp.exp(s - m)                                   # one EUP exp
    p = p * pl.reciprocal(jnp.sum(p, axis=-1, keepdims=True), approx=True)

    # ---- p @ v and fused output projection (independent partials, tree-sum) -
    # concat_h(o_h) @ Wp == sum_h o_h @ Wp[h*Dh:(h+1)*Dh, :]; the partial
    # matmuls are independent (MXU pushes overlap) and pairwise tree-summed,
    # so there is no serial MXU->pop->add chain.
    out_rows = []
    for b in range(B):
        r0 = b * T
        partials = []
        for h in range(H):
            c0 = h * Dh
            idx = b * H + h
            p_bh = p[idx * T:(idx + 1) * T, :]           # (T, T) sublane slice
            v_bh = v[r0:r0 + T, c0:c0 + Dh]              # (T, Dh)
            o_bh = jnp.dot(p_bh, v_bh, preferred_element_type=jnp.float32)
            partials.append(
                jnp.dot(o_bh, wproj_ref[c0:c0 + Dh, :],
                        preferred_element_type=jnp.float32))           # (T, E)
        while len(partials) > 1:                         # pairwise tree-sum
            nxt = [a + b2 for a, b2 in zip(partials[0::2], partials[1::2])]
            if len(partials) % 2:
                nxt.append(partials[-1])
            partials = nxt
        out_rows.append(partials[0])

    out = jnp.concatenate(out_rows, axis=0)              # (B*T, E)
    o_ref[...] = out + bproj_ref[...]                    # single fused store


def attention_forward(x, attn_w, attn_b, proj_w, proj_b, n_heads):
    """x: [B, T, E] -> [B, T, E]. One fused pallas_call, single grid step."""
    B, T, E = x.shape
    scale = (E // n_heads) ** (-0.5)
    kernel = functools.partial(_attention_kernel, batch=B, seq=T,
                               n_heads=n_heads, scale=scale)
    out2d = pl.pallas_call(
        kernel,
        out_shape=jax.ShapeDtypeStruct((B * T, E), jnp.float32),
        grid=(1,),
        in_specs=[
            pl.BlockSpec((B * T, E), lambda i: (0, 0)),
            pl.BlockSpec((E, 3 * E), lambda i: (0, 0)),
            pl.BlockSpec((1, 3 * E), lambda i: (0, 0)),
            pl.BlockSpec((E, E), lambda i: (0, 0)),
            pl.BlockSpec((1, E), lambda i: (0, 0)),
        ],
        out_specs=pl.BlockSpec((B * T, E), lambda i: (0, 0)),
        compiler_params=pltpu.CompilerParams(
            dimension_semantics=("arbitrary",)),
    )(x.reshape(B * T, E), attn_w, attn_b.reshape(1, 3 * E),
      proj_w, proj_b.reshape(1, E))
    return out2d.reshape(B, T, E)     # free row-major view in HBM


# --------------------------- pure-JAX reference ------------------------------
def attention_reference(x, attn_w, attn_b, proj_w, proj_b, n_heads):
    B, T, E = x.shape
    Dh = E // n_heads
    qkv = x @ attn_w + attn_b
    q, k, v = jnp.split(qkv, 3, axis=-1)

    def heads(t):
        return t.reshape(B, T, n_heads, Dh).transpose(0, 2, 1, 3)

    q, k, v = heads(q), heads(k), heads(v)
    s = jnp.einsum("bhqd,bhkd->bhqk", q, k) * (Dh ** (-0.5))
    mask = jnp.tril(jnp.ones((T, T), bool))
    s = jnp.where(mask, s, -jnp.inf)
    p = jax.nn.softmax(s, axis=-1)
    o = jnp.einsum("bhqk,bhkd->bhqd", p, v).transpose(0, 2, 1, 3).reshape(B, T, E)
    return o @ proj_w + proj_b


# ----------------------------------- main -------------------------------------
if __name__ == "__main__":
    cfg = Cfg()
    B, T, E = 2, cfg.seq_len, cfg.embed_dim

    key = jax.random.PRNGKey(0)
    kx, kw1, kb1, kw2, kb2 = jax.random.split(key, 5)

    x = jax.random.normal(kx, (B, T, E), dtype=jnp.float32)
    attn_w = (0.02 * jax.random.normal(kw1, (E, 3 * E))).astype(jnp.float32)
    attn_b = (0.02 * jax.random.normal(kb1, (3 * E,))).astype(jnp.float32)
    proj_w = (0.02 * jax.random.normal(kw2, (E, E))).astype(jnp.float32)
    proj_b = (0.02 * jax.random.normal(kb2, (E,))).astype(jnp.float32)

    fwd = jax.jit(functools.partial(attention_forward, n_heads=cfg.num_heads))
    out = jax.block_until_ready(fwd(x, attn_w, attn_b, proj_w, proj_b))

    ref = jax.block_until_ready(
        attention_reference(x, attn_w, attn_b, proj_w, proj_b, cfg.num_heads))

    assert out.shape == (B, T, E), out.shape
    assert bool(jnp.all(jnp.isfinite(out)))
    np.testing.assert_allclose(np.asarray(out), np.asarray(ref),
                               rtol=1e-2, atol=1e-3)
    print("KERNEL_OK")
</pallas_src>

<mosaic_0001>
module attributes {stable_mosaic.version = 11 : i64} {
  func.func @_attention_kernel(%arg0: i32, %arg1: memref<16x32xf32, #tpu.memory_space<vmem>>, %arg2: memref<32x96xf32, #tpu.memory_space<vmem>>, %arg3: memref<1x96xf32, #tpu.memory_space<vmem>>, %arg4: memref<32x32xf32, #tpu.memory_space<vmem>>, %arg5: memref<1x32xf32, #tpu.memory_space<vmem>>, %arg6: memref<16x32xf32, #tpu.memory_space<vmem>>) attributes {dimension_semantics = [#tpu.dimension_semantics<arbitrary>], iteration_bounds = array<i64: 1>, scalar_prefetch = 0 : i64, scratch_operands = 0 : i64, tpu.core_type = #tpu.core_type<tc>, window_params = [{pipeline_mode = #tpu.pipeline_mode<synchronous>, transform_indices = @transform_0, window_bounds = array<i64: 16, 32>}, {pipeline_mode = #tpu.pipeline_mode<synchronous>, transform_indices = @transform_1, window_bounds = array<i64: 32, 96>}, {pipeline_mode = #tpu.pipeline_mode<synchronous>, transform_indices = @transform_2, window_bounds = array<i64: 1, 96>}, {pipeline_mode = #tpu.pipeline_mode<synchronous>, transform_indices = @transform_3, window_bounds = array<i64: 32, 32>}, {pipeline_mode = #tpu.pipeline_mode<synchronous>, transform_indices = @transform_4, window_bounds = array<i64: 1, 32>}, {pipeline_mode = #tpu.pipeline_mode<synchronous>, transform_indices = @transform_5, window_bounds = array<i64: 16, 32>}]} {
    %c0 = arith.constant 0 : index
    %c0_0 = arith.constant 0 : index
    %0 = vector.load %arg1[%c0, %c0_0] : memref<16x32xf32, #tpu.memory_space<vmem>>, vector<16x32xf32>
    %c0_1 = arith.constant 0 : index
    %c0_2 = arith.constant 0 : index
    %1 = vector.load %arg2[%c0_1, %c0_2] : memref<32x96xf32, #tpu.memory_space<vmem>>, vector<32x96xf32>
    %cst = arith.constant dense<0.000000e+00> : vector<16x96xf32>
    %2 = tpu.matmul %0, %1, %cst {dimension_numbers = #tpu.dot_dimension_numbers<[1], [0], [0], [1], [0, 0, 1, 1], [], []>} : vector<16x32xf32>, vector<32x96xf32>, vector<16x96xf32> -> vector<16x96xf32>
    %c0_3 = arith.constant 0 : index
    %c0_4 = arith.constant 0 : index
    %3 = vector.load %arg3[%c0_3, %c0_4] : memref<1x96xf32, #tpu.memory_space<vmem>>, vector<1x96xf32>
    %4 = vector.broadcast %3 : vector<1x96xf32> to vector<16x96xf32>
    %5 = arith.addf %2, %4 : vector<16x96xf32>
    %6 = vector.extract_strided_slice %5 {offsets = [0, 0], sizes = [16, 32], strides = [1, 1]} : vector<16x96xf32> to vector<16x32xf32>
    %cst_5 = arith.constant 0.353553385 : f32
    %7 = vector.broadcast %cst_5 : f32 to vector<16x32xf32>
    %8 = arith.mulf %6, %7 : vector<16x32xf32>
    %9 = vector.extract_strided_slice %5 {offsets = [0, 32], sizes = [16, 32], strides = [1, 1]} : vector<16x96xf32> to vector<16x32xf32>
    %10 = vector.extract_strided_slice %5 {offsets = [0, 64], sizes = [16, 32], strides = [1, 1]} : vector<16x96xf32> to vector<16x32xf32>
    %11 = vector.extract_strided_slice %8 {offsets = [0, 0], sizes = [8, 8], strides = [1, 1]} : vector<16x32xf32> to vector<8x8xf32>
    %12 = vector.extract_strided_slice %9 {offsets = [0, 0], sizes = [8, 8], strides = [1, 1]} : vector<16x32xf32> to vector<8x8xf32>
    %cst_6 = arith.constant dense<0.000000e+00> : vector<8x8xf32>
    %13 = tpu.matmul %11, %12, %cst_6 {dimension_numbers = #tpu.dot_dimension_numbers<[1], [1], [0], [0], [0, 0, 1, 0], [], []>} : vector<8x8xf32>, vector<8x8xf32>, vector<8x8xf32> -> vector<8x8xf32>
    %14 = vector.extract_strided_slice %8 {offsets = [0, 8], sizes = [8, 8], strides = [1, 1]} : vector<16x32xf32> to vector<8x8xf32>
    %15 = vector.extract_strided_slice %9 {offsets = [0, 8], sizes = [8, 8], strides = [1, 1]} : vector<16x32xf32> to vector<8x8xf32>
    %cst_7 = arith.constant dense<0.000000e+00> : vector<8x8xf32>
    %16 = tpu.matmul %14, %15, %cst_7 {dimension_numbers = #tpu.dot_dimension_numbers<[1], [1], [0], [0], [0, 0, 1, 0], [], []>} : vector<8x8xf32>, vector<8x8xf32>, vector<8x8xf32> -> vector<8x8xf32>
    %17 = vector.extract_strided_slice %8 {offsets = [0, 16], sizes = [8, 8], strides = [1, 1]} : vector<16x32xf32> to vector<8x8xf32>
    %18 = vector.extract_strided_slice %9 {offsets = [0, 16], sizes = [8, 8], strides = [1, 1]} : vector<16x32xf32> to vector<8x8xf32>
    %cst_8 = arith.constant dense<0.000000e+00> : vector<8x8xf32>
    %19 = tpu.matmul %17, %18, %cst_8 {dimension_numbers = #tpu.dot_dimension_numbers<[1], [1], [0], [0], [0, 0, 1, 0], [], []>} : vector<8x8xf32>, vector<8x8xf32>, vector<8x8xf32> -> vector<8x8xf32>
    %20 = vector.extract_strided_slice %8 {offsets = [0, 24], sizes = [8, 8], strides = [1, 1]} : vector<16x32xf32> to vector<8x8xf32>
    %21 = vector.extract_strided_slice %9 {offsets = [0, 24], sizes = [8, 8], strides = [1, 1]} : vector<16x32xf32> to vector<8x8xf32>
    %cst_9 = arith.constant dense<0.000000e+00> : vector<8x8xf32>
    %22 = tpu.matmul %20, %21, %cst_9 {dimension_numbers = #tpu.dot_dimension_numbers<[1], [1], [0], [0], [0, 0, 1, 0], [], []>} : vector<8x8xf32>, vector<8x8xf32>, vector<8x8xf32> -> vector<8x8xf32>
    %23 = vector.extract_strided_slice %8 {offsets = [8, 0], sizes = [8, 8], strides = [1, 1]} : vector<16x32xf32> to vector<8x8xf32>
    %24 = vector.extract_strided_slice %9 {offsets = [8, 0], sizes = [8, 8], strides = [1, 1]} : vector<16x32xf32> to vector<8x8xf32>
    %cst_10 = arith.constant dense<0.000000e+00> : vector<8x8xf32>
    %25 = tpu.matmul %23, %24, %cst_10 {dimension_numbers = #tpu.dot_dimension_numbers<[1], [1], [0], [0], [0, 0, 1, 0], [], []>} : vector<8x8xf32>, vector<8x8xf32>, vector<8x8xf32> -> vector<8x8xf32>
    %26 = vector.extract_strided_slice %8 {offsets = [8, 8], sizes = [8, 8], strides = [1, 1]} : vector<16x32xf32> to vector<8x8xf32>
    %27 = vector.extract_strided_slice %9 {offsets = [8, 8], sizes = [8, 8], strides = [1, 1]} : vector<16x32xf32> to vector<8x8xf32>
    %cst_11 = arith.constant dense<0.000000e+00> : vector<8x8xf32>
    %28 = tpu.matmul %26, %27, %cst_11 {dimension_numbers = #tpu.dot_dimension_numbers<[1], [1], [0], [0], [0, 0, 1, 0], [], []>} : vector<8x8xf32>, vector<8x8xf32>, vector<8x8xf32> -> vector<8x8xf32>
    %29 = vector.extract_strided_slice %8 {offsets = [8, 16], sizes = [8, 8], strides = [1, 1]} : vector<16x32xf32> to vector<8x8xf32>
    %30 = vector.extract_strided_slice %9 {offsets = [8, 16], sizes = [8, 8], strides = [1, 1]} : vector<16x32xf32> to vector<8x8xf32>
    %cst_12 = arith.constant dense<0.000000e+00> : vector<8x8xf32>
    %31 = tpu.matmul %29, %30, %cst_12 {dimension_numbers = #tpu.dot_dimension_numbers<[1], [1], [0], [0], [0, 0, 1, 0], [], []>} : vector<8x8xf32>, vector<8x8xf32>, vector<8x8xf32> -> vector<8x8xf32>
    %32 = vector.extract_strided_slice %8 {offsets = [8, 24], sizes = [8, 8], strides = [1, 1]} : vector<16x32xf32> to vector<8x8xf32>
    %33 = vector.extract_strided_slice %9 {offsets = [8, 24], sizes = [8, 8], strides = [1, 1]} : vector<16x32xf32> to vector<8x8xf32>
    %cst_13 = arith.constant dense<0.000000e+00> : vector<8x8xf32>
    %34 = tpu.matmul %32, %33, %cst_13 {dimension_numbers = #tpu.dot_dimension_numbers<[1], [1], [0], [0], [0, 0, 1, 0], [], []>} : vector<8x8xf32>, vector<8x8xf32>, vector<8x8xf32> -> vector<8x8xf32>
    %35 = tpu.concatenate %13, %16, %19, %22, %25, %28, %31, %34 in 0 : vector<8x8xf32>, vector<8x8xf32>, vector<8x8xf32>, vector<8x8xf32>, vector<8x8xf32>, vector<8x8xf32>, vector<8x8xf32>, vector<8x8xf32> -> vector<64x8xf32>
    %36 = tpu.iota {dimensions = array<i32: 0>} : vector<64x8xi32>
    %c8_i32 = arith.constant 8 : i32
    %c0_i32 = arith.constant 0 : i32
    %37 = arith.cmpi eq, %c8_i32, %c0_i32 : i32
    %c1_i32 = arith.constant 1 : i32
    %38 = arith.select %37, %c1_i32, %c8_i32 : i32
    %39 = vector.broadcast %38 : i32 to vector<64x8xi32>
    %40 = arith.remsi %36, %39 : vector<64x8xi32>
    %c0_i32_14 = arith.constant 0 : i32
    %41 = vector.broadcast %c0_i32_14 : i32 to vector<64x8xi32>
    %42 = arith.cmpi ne, %40, %41 : vector<64x8xi32>
    %c0_i32_15 = arith.constant 0 : i32
    %43 = vector.broadcast %c0_i32_15 : i32 to vector<64x8xi32>
    %44 = arith.cmpi slt, %40, %43 : vector<64x8xi32>
    %c0_i32_16 = arith.constant 0 : i32
    %45 = arith.cmpi slt, %38, %c0_i32_16 : i32
    %46 = vector.broadcast %45 : i1 to vector<64x8xi1>
    %47 = vector.broadcast %46 : vector<64x8xi1> to vector<64x8xi1>
    %48 = arith.xori %44, %47 : vector<64x8xi1>
    %49 = arith.andi %48, %42 : vector<64x8xi1>
    %50 = vector.broadcast %38 : i32 to vector<64x8xi32>
    %51 = arith.addi %40, %50 : vector<64x8xi32>
    %52 = arith.select %49, %51, %40 : vector<64x8xi1>, vector<64x8xi32>
    %53 = tpu.iota {dimensions = array<i32: 1>} : vector<64x8xi32>
    %54 = arith.cmpi sle, %53, %52 : vector<64x8xi32>
    %cst_17 = arith.constant 0.000000e+00 : f32
    %cst_18 = arith.constant -1.000000e+30 : f32
    %55 = vector.broadcast %cst_17 : f32 to vector<64x8xf32>
    %56 = vector.broadcast %cst_18 : f32 to vector<64x8xf32>
    %57 = arith.select %54, %55, %56 : vector<64x8xi1>, vector<64x8xf32>
    %58 = arith.addf %35, %57 : vector<64x8xf32>
    %cst_19 = arith.constant dense<0xFF800000> : vector<64xf32>
    %59 = vector.multi_reduction <maximumf>, %58, %cst_19 [1] : vector<64x8xf32> to vector<64xf32>
    %60 = vector.shape_cast %59 : vector<64xf32> to vector<64x1xf32>
    %61 = vector.broadcast %60 : vector<64x1xf32> to vector<64x8xf32>
    %62 = arith.subf %58, %61 : vector<64x8xf32>
    %63 = math.exp %62 : vector<64x8xf32>
    %cst_20 = arith.constant dense<0.000000e+00> : vector<64xf32>
    %64 = vector.multi_reduction <add>, %63, %cst_20 [1] : vector<64x8xf32> to vector<64xf32>
    %65 = vector.shape_cast %64 : vector<64xf32> to vector<64x1xf32>
    %66 = tpu.reciprocal %65 {approx = true} : vector<64x1xf32> -> vector<64x1xf32>
    %67 = vector.broadcast %66 : vector<64x1xf32> to vector<64x8xf32>
    %68 = arith.mulf %63, %67 : vector<64x8xf32>
    %69 = vector.extract_strided_slice %68 {offsets = [0, 0], sizes = [8, 8], strides = [1, 1]} : vector<64x8xf32> to vector<8x8xf32>
    %70 = vector.extract_strided_slice %10 {offsets = [0, 0], sizes = [8, 8], strides = [1, 1]} : vector<16x32xf32> to vector<8x8xf32>
    %cst_21 = arith.constant dense<0.000000e+00> : vector<8x8xf32>
    %71 = tpu.matmul %69, %70, %cst_21 {dimension_numbers = #tpu.dot_dimension_numbers<[1], [0], [0], [1], [0, 0, 1, 1], [], []>} : vector<8x8xf32>, vector<8x8xf32>, vector<8x8xf32> -> vector<8x8xf32>
    %c0_22 = arith.constant 0 : index
    %c0_23 = arith.constant 0 : index
    %72 = vector.load %arg4[%c0_22, %c0_23] : memref<32x32xf32, #tpu.memory_space<vmem>>, vector<8x32xf32>
    %cst_24 = arith.constant dense<0.000000e+00> : vector<8x32xf32>
    %73 = tpu.matmul %71, %72, %cst_24 {dimension_numbers = #tpu.dot_dimension_numbers<[1], [0], [0], [1], [0, 0, 1, 1], [], []>} : vector<8x8xf32>, vector<8x32xf32>, vector<8x32xf32> -> vector<8x32xf32>
    %74 = vector.extract_strided_slice %68 {offsets = [8, 0], sizes = [8, 8], strides = [1, 1]} : vector<64x8xf32> to vector<8x8xf32>
    %75 = vector.extract_strided_slice %10 {offsets = [0, 8], sizes = [8, 8], strides = [1, 1]} : vector<16x32xf32> to vector<8x8xf32>
    %cst_25 = arith.constant dense<0.000000e+00> : vector<8x8xf32>
    %76 = tpu.matmul %74, %75, %cst_25 {dimension_numbers = #tpu.dot_dimension_numbers<[1], [0], [0], [1], [0, 0, 1, 1], [], []>} : vector<8x8xf32>, vector<8x8xf32>, vector<8x8xf32> -> vector<8x8xf32>
    %c8 = arith.constant 8 : index
    %c0_26 = arith.constant 0 : index
    %77 = vector.load %arg4[%c8, %c0_26] : memref<32x32xf32, #tpu.memory_space<vmem>>, vector<8x32xf32>
    %cst_27 = arith.constant dense<0.000000e+00> : vector<8x32xf32>
    %78 = tpu.matmul %76, %77, %cst_27 {dimension_numbers = #tpu.dot_dimension_numbers<[1], [0], [0], [1], [0, 0, 1, 1], [], []>} : vector<8x8xf32>, vector<8x32xf32>, vector<8x32xf32> -> vector<8x32xf32>
    %79 = vector.extract_strided_slice %68 {offsets = [16, 0], sizes = [8, 8], strides = [1, 1]} : vector<64x8xf32> to vector<8x8xf32>
    %80 = vector.extract_strided_slice %10 {offsets = [0, 16], sizes = [8, 8], strides = [1, 1]} : vector<16x32xf32> to vector<8x8xf32>
    %cst_28 = arith.constant dense<0.000000e+00> : vector<8x8xf32>
    %81 = tpu.matmul %79, %80, %cst_28 {dimension_numbers = #tpu.dot_dimension_numbers<[1], [0], [0], [1], [0, 0, 1, 1], [], []>} : vector<8x8xf32>, vector<8x8xf32>, vector<8x8xf32> -> vector<8x8xf32>
    %c16 = arith.constant 16 : index
    %c0_29 = arith.constant 0 : index
    %82 = vector.load %arg4[%c16, %c0_29] : memref<32x32xf32, #tpu.memory_space<vmem>>, vector<8x32xf32>
    %cst_30 = arith.constant dense<0.000000e+00> : vector<8x32xf32>
    %83 = tpu.matmul %81, %82, %cst_30 {dimension_numbers = #tpu.dot_dimension_numbers<[1], [0], [0], [1], [0, 0, 1, 1], [], []>} : vector<8x8xf32>, vector<8x32xf32>, vector<8x32xf32> -> vector<8x32xf32>
    %84 = vector.extract_strided_slice %68 {offsets = [24, 0], sizes = [8, 8], strides = [1, 1]} : vector<64x8xf32> to vector<8x8xf32>
    %85 = vector.extract_strided_slice %10 {offsets = [0, 24], sizes = [8, 8], strides = [1, 1]} : vector<16x32xf32> to vector<8x8xf32>
    %cst_31 = arith.constant dense<0.000000e+00> : vector<8x8xf32>
    %86 = tpu.matmul %84, %85, %cst_31 {dimension_numbers = #tpu.dot_dimension_numbers<[1], [0], [0], [1], [0, 0, 1, 1], [], []>} : vector<8x8xf32>, vector<8x8xf32>, vector<8x8xf32> -> vector<8x8xf32>
    %c24 = arith.constant 24 : index
    %c0_32 = arith.constant 0 : index
    %87 = vector.load %arg4[%c24, %c0_32] : memref<32x32xf32, #tpu.memory_space<vmem>>, vector<8x32xf32>
    %cst_33 = arith.constant dense<0.000000e+00> : vector<8x32xf32>
    %88 = tpu.matmul %86, %87, %cst_33 {dimension_numbers = #tpu.dot_dimension_numbers<[1], [0], [0], [1], [0, 0, 1, 1], [], []>} : vector<8x8xf32>, vector<8x32xf32>, vector<8x32xf32> -> vector<8x32xf32>
    %89 = arith.addf %73, %78 : vector<8x32xf32>
    %90 = arith.addf %83, %88 : vector<8x32xf32>
    %91 = arith.addf %89, %90 : vector<8x32xf32>
    %92 = vector.extract_strided_slice %68 {offsets = [32, 0], sizes = [8, 8], strides = [1, 1]} : vector<64x8xf32> to vector<8x8xf32>
    %93 = vector.extract_strided_slice %10 {offsets = [8, 0], sizes = [8, 8], strides = [1, 1]} : vector<16x32xf32> to vector<8x8xf32>
    %cst_34 = arith.constant dense<0.000000e+00> : vector<8x8xf32>
    %94 = tpu.matmul %92, %93, %cst_34 {dimension_numbers = #tpu.dot_dimension_numbers<[1], [0], [0], [1], [0, 0, 1, 1], [], []>} : vector<8x8xf32>, vector<8x8xf32>, vector<8x8xf32> -> vector<8x8xf32>
    %c0_35 = arith.constant 0 : index
    %c0_36 = arith.constant 0 : index
    %95 = vector.load %arg4[%c0_35, %c0_36] : memref<32x32xf32, #tpu.memory_space<vmem>>, vector<8x32xf32>
    %cst_37 = arith.constant dense<0.000000e+00> : vector<8x32xf32>
    %96 = tpu.matmul %94, %95, %cst_37 {dimension_numbers = #tpu.dot_dimension_numbers<[1], [0], [0], [1], [0, 0, 1, 1], [], []>} : vector<8x8xf32>, vector<8x32xf32>, vector<8x32xf32> -> vector<8x32xf32>
    %97 = vector.extract_strided_slice %68 {offsets = [40, 0], sizes = [8, 8], strides = [1, 1]} : vector<64x8xf32> to vector<8x8xf32>
    %98 = vector.extract_strided_slice %10 {offsets = [8, 8], sizes = [8, 8], strides = [1, 1]} : vector<16x32xf32> to vector<8x8xf32>
    %cst_38 = arith.constant dense<0.000000e+00> : vector<8x8xf32>
    %99 = tpu.matmul %97, %98, %cst_38 {dimension_numbers = #tpu.dot_dimension_numbers<[1], [0], [0], [1], [0, 0, 1, 1], [], []>} : vector<8x8xf32>, vector<8x8xf32>, vector<8x8xf32> -> vector<8x8xf32>
    %c8_39 = arith.constant 8 : index
    %c0_40 = arith.constant 0 : index
    %100 = vector.load %arg4[%c8_39, %c0_40] : memref<32x32xf32, #tpu.memory_space<vmem>>, vector<8x32xf32>
    %cst_41 = arith.constant dense<0.000000e+00> : vector<8x32xf32>
    %101 = tpu.matmul %99, %100, %cst_41 {dimension_numbers = #tpu.dot_dimension_numbers<[1], [0], [0], [1], [0, 0, 1, 1], [], []>} : vector<8x8xf32>, vector<8x32xf32>, vector<8x32xf32> -> vector<8x32xf32>
    %102 = vector.extract_strided_slice %68 {offsets = [48, 0], sizes = [8, 8], strides = [1, 1]} : vector<64x8xf32> to vector<8x8xf32>
    %103 = vector.extract_strided_slice %10 {offsets = [8, 16], sizes = [8, 8], strides = [1, 1]} : vector<16x32xf32> to vector<8x8xf32>
    %cst_42 = arith.constant dense<0.000000e+00> : vector<8x8xf32>
    %104 = tpu.matmul %102, %103, %cst_42 {dimension_numbers = #tpu.dot_dimension_numbers<[1], [0], [0], [1], [0, 0, 1, 1], [], []>} : vector<8x8xf32>, vector<8x8xf32>, vector<8x8xf32> -> vector<8x8xf32>
    %c16_43 = arith.constant 16 : index
    %c0_44 = arith.constant 0 : index
    %105 = vector.load %arg4[%c16_43, %c0_44] : memref<32x32xf32, #tpu.memory_space<vmem>>, vector<8x32xf32>
    %cst_45 = arith.constant dense<0.000000e+00> : vector<8x32xf32>
    %106 = tpu.matmul %104, %105, %cst_45 {dimension_numbers = #tpu.dot_dimension_numbers<[1], [0], [0], [1], [0, 0, 1, 1], [], []>} : vector<8x8xf32>, vector<8x32xf32>, vector<8x32xf32> -> vector<8x32xf32>
    %107 = vector.extract_strided_slice %68 {offsets = [56, 0], sizes = [8, 8], strides = [1, 1]} : vector<64x8xf32> to vector<8x8xf32>
    %108 = vector.extract_strided_slice %10 {offsets = [8, 24], sizes = [8, 8], strides = [1, 1]} : vector<16x32xf32> to vector<8x8xf32>
    %cst_46 = arith.constant dense<0.000000e+00> : vector<8x8xf32>
    %109 = tpu.matmul %107, %108, %cst_46 {dimension_numbers = #tpu.dot_dimension_numbers<[1], [0], [0], [1], [0, 0, 1, 1], [], []>} : vector<8x8xf32>, vector<8x8xf32>, vector<8x8xf32> -> vector<8x8xf32>
    %c24_47 = arith.constant 24 : index
    %c0_48 = arith.constant 0 : index
    %110 = vector.load %arg4[%c24_47, %c0_48] : memref<32x32xf32, #tpu.memory_space<vmem>>, vector<8x32xf32>
    %cst_49 = arith.constant dense<0.000000e+00> : vector<8x32xf32>
    %111 = tpu.matmul %109, %110, %cst_49 {dimension_numbers = #tpu.dot_dimension_numbers<[1], [0], [0], [1], [0, 0, 1, 1], [], []>} : vector<8x8xf32>, vector<8x32xf32>, vector<8x32xf32> -> vector<8x32xf32>
    %112 = arith.addf %96, %101 : vector<8x32xf32>
    %113 = arith.addf %106, %111 : vector<8x32xf32>
    %114 = arith.addf %112, %113 : vector<8x32xf32>
    %115 = tpu.concatenate %91, %114 in 0 : vector<8x32xf32>, vector<8x32xf32> -> vector<16x32xf32>
    %c0_50 = arith.constant 0 : index
    %c0_51 = arith.constant 0 : index
    %116 = vector.load %arg5[%c0_50, %c0_51] : memref<1x32xf32, #tpu.memory_space<vmem>>, vector<1x32xf32>
    %117 = vector.broadcast %116 : vector<1x32xf32> to vector<16x32xf32>
    %118 = arith.addf %115, %117 : vector<16x32xf32>
    %c0_52 = arith.constant 0 : index
    %c0_53 = arith.constant 0 : index
    %119 = vector.load %arg6[%c0_52, %c0_53] : memref<16x32xf32, #tpu.memory_space<vmem>>, vector<16x32xf32>
    tpu.vector_store %arg6[%c0_52, %c0_53], %118 {strides = array<i32>} : memref<16x32xf32, #tpu.memory_space<vmem>>, vector<16x32xf32>,
    return
  }
  func.func @transform_0(%arg0: i32) -> (i32, i32) {
    %c0_i32 = arith.constant 0 : i32
    %c0_i32_0 = arith.constant 0 : i32
    %c0_i32_1 = arith.constant 0 : i32
    return %c0_i32, %c0_i32_0 : i32, i32
  }
  func.func @transform_1(%arg0: i32) -> (i32, i32) {
    %c0_i32 = arith.constant 0 : i32
    %c0_i32_0 = arith.constant 0 : i32
    %c0_i32_1 = arith.constant 0 : i32
    return %c0_i32, %c0_i32_0 : i32, i32
  }
  func.func @transform_2(%arg0: i32) -> (i32, i32) {
    %c0_i32 = arith.constant 0 : i32
    %c0_i32_0 = arith.constant 0 : i32
    %c0_i32_1 = arith.constant 0 : i32
    return %c0_i32, %c0_i32_0 : i32, i32
  }
  func.func @transform_3(%arg0: i32) -> (i32, i32) {
    %c0_i32 = arith.constant 0 : i32
    %c0_i32_0 = arith.constant 0 : i32
    %c0_i32_1 = arith.constant 0 : i32
    return %c0_i32, %c0_i32_0 : i32, i32
  }
  func.func @transform_4(%arg0: i32) -> (i32, i32) {
    %c0_i32 = arith.constant 0 : i32
    %c0_i32_0 = arith.constant 0 : i32
    %c0_i32_1 = arith.constant 0 : i32
    return %c0_i32, %c0_i32_0 : i32, i32
  }
  func.func @transform_5(%arg0: i32) -> (i32, i32) {
    %c0_i32 = arith.constant 0 : i32
    %c0_i32_0 = arith.constant 0 : i32
    %c0_i32_1 = arith.constant 0 : i32
    return %c0_i32, %c0_i32_0 : i32, i32
  }
}

</mosaic_0001>

<llo_original>
// kernel: attention_forward.1
$region0: #{attention_forward.1}
  #allocation0 [shape = 'u32[]', space=smem, size = 0x4, offset = 0x4, fixed_abs, tag = 'smem constant byte address 0x4 - core index']
  #allocation1 [shape = 'u32[144,128]{1,0:T(1,128)}', space=vmem, size = 0x12000, scoped, tag = 'internal scratch']
  %s0 = inlined_call_operand.hbm [shape: f32[16,32], index: 0, kind: input, shape index: {}]
  %s1 = inlined_call_operand.hbm [shape: f32[32,96], index: 1, kind: input, shape index: {}]
  %s2 = inlined_call_operand.vmem [shape: f32[1,96], index: 2, kind: input, shape index: {}]
  %s3 = inlined_call_operand.hbm [shape: f32[32,32], index: 3, kind: input, shape index: {}]
  %s4 = inlined_call_operand.vmem [shape: f32[1,32], index: 4, kind: input, shape index: {}]
  %s5 = inlined_call_operand.hbm [shape: f32[16,32], index: 5, kind: output, shape index: {}]
  %s6 = sld [smem:[#allocation0]]
  $region42: #{attention_forward.1} parent=0
    _
  %s8 = ssub.s32 1, %s6
  %s9 = scalar_select 0, %s8, %s6
  $region1: #{attention_forward.1} parent=0
    #allocation2 [shape = 'u8[8192]{0}', space=vmem, size = 0x2000, scoped, tag = 'input window, operand 0, single buffered']
    #allocation3 [shape = 's32[1]{0}', space=sflag, size = 0x4, scoped, tag = 'scoped memory for attention_forward.1']
    #allocation4 [shape = 's32[1]{0}', space=sflag, size = 0x4, scoped, tag = 'scoped memory for attention_forward.1']
    #allocation5 [shape = 'u8[16384]{0}', space=vmem, size = 0x4000, scoped, tag = 'input window, operand 1, single buffered']
    #allocation6 [shape = 's32[1]{0}', space=sflag, size = 0x4, scoped, tag = 'scoped memory for attention_forward.1']
    #allocation7 [shape = 'u8[16384]{0}', space=vmem, size = 0x4000, scoped, tag = 'input window, operand 3, single buffered']
    #allocation8 [shape = 'u8[8192]{0}', space=vmem, size = 0x2000, scoped, tag = 'output window, operand 0, single buffered']
    %10 = vsyncpa [#allocation3], 0
    %11 = vsyncpa [#allocation6], 0
    %12 = vsyncpa [#allocation4], 0
    // Predicated region
    $region2: #{attention_forward.1} parent=1 // pred_check
      _
    $region3: #{attention_forward.1} parent=1 // pred_check_branch
      %14 = sbr.rel (0) target = $region5
    $region4: #{attention_forward.1} parent=1 // pred_region
      %s16 = ssub.s32 256, 256
      %17 = vsyncadd [#allocation3], %s16
      %s18 = sshll.u32 [#allocation2], 4
      %s19 = int_to_ptr.vmem [resolvable:$true] %s18
      %24 = dma.hbm_to_vmem [thread:$0]  %s0, 256, %s19, [#allocation3], 128, 128, 8
    $region5: #{attention_forward.1} parent=1 // pred_fallthru
      _
    // Predicated region
    $region6: #{attention_forward.1} parent=1 // pred_check
      _
    $region7: #{attention_forward.1} parent=1 // pred_check_branch
      %26 = sbr.rel (0) target = $region9
    $region8: #{attention_forward.1} parent=1 // pred_region
      %s28 = ssub.s32 512, 512
      %29 = vsyncadd [#allocation6], %s28
      %s30 = sshll.u32 [#allocation5], 4
      %s31 = int_to_ptr.vmem [resolvable:$true] %s30
      %36 = dma.hbm_to_vmem [thread:$0]  %s1, 512, %s31, [#allocation6], 128, 128, 8
    $region9: #{attention_forward.1} parent=1 // pred_fallthru
      _
    // Predicated region
    $region10: #{attention_forward.1} parent=1 // pred_check
      _
    $region11: #{attention_forward.1} parent=1 // pred_check_branch
      %38 = sbr.rel (0) target = $region13
    $region12: #{attention_forward.1} parent=1 // pred_region
      _
    $region13: #{attention_forward.1} parent=1 // pred_fallthru
      _
    // Predicated region
    $region14: #{attention_forward.1} parent=1 // pred_check
      _
    $region15: #{attention_forward.1} parent=1 // pred_check_branch
      %40 = sbr.rel (0) target = $region17
    $region16: #{attention_forward.1} parent=1 // pred_region
      %s42 = ssub.s32 512, 512
      %43 = vsyncadd [#allocation6], %s42
      %s44 = sshll.u32 [#allocation7], 4
      %s45 = int_to_ptr.vmem [resolvable:$true] %s44
      %50 = dma.hbm_to_vmem [thread:$0]  %s3, 512, %s45, [#allocation6], 128, 128, 8
    $region17: #{attention_forward.1} parent=1 // pred_fallthru
      _
    // Predicated region
    $region18: #{attention_forward.1} parent=1 // pred_check
      _
    $region19: #{attention_forward.1} parent=1 // pred_check_branch
      %52 = sbr.rel (0) target = $region21
    $region20: #{attention_forward.1} parent=1 // pred_region
      _
    $region21: #{attention_forward.1} parent=1 // pred_fallthru
      _
    // Predicated region
    $region22: #{attention_forward.1} parent=1 // pred_check
      _
    $region23: #{attention_forward.1} parent=1 // pred_check_branch
      %54 = sbr.rel (0) target = $region25
    $region24: #{attention_forward.1} parent=1 // pred_region
      %55 = dma.done [#allocation3], 256
    $region25: #{attention_forward.1} parent=1 // pred_fallthru
      _
    // Predicated region
    $region26: #{attention_forward.1} parent=1 // pred_check
      _
    $region27: #{attention_forward.1} parent=1 // pred_check_branch
      %57 = sbr.rel (0) target = $region29
    $region28: #{attention_forward.1} parent=1 // pred_region
      %58 = dma.done [#allocation6], 512
    $region29: #{attention_forward.1} parent=1 // pred_fallthru
      _
    // Predicated region
    $region30: #{attention_forward.1} parent=1 // pred_check
      _
    $region31: #{attention_forward.1} parent=1 // pred_check_branch
      %60 = sbr.rel (0) target = $region33
    $region32: #{attention_forward.1} parent=1 // pred_region
      %61 = dma.done [#allocation6], 512
    $region33: #{attention_forward.1} parent=1 // pred_fallthru
      _
    %v62 = vld [vmem:[#allocation2] sm:$0xff]
    %v63 = vld [vmem:[#allocation2 + $0x8] sm:$0xff]
    %v64 = vld [vmem:[#allocation5] sm:$0xff]
    %v65 = vld [vmem:[#allocation5 + $0x8] sm:$0xff]
    %v66 = vld [vmem:[#allocation5 + $0x10] sm:$0xff]
    %v67 = vld [vmem:[#allocation5 + $0x18] sm:$0xff]
    %v68 = vld [vmem:[%s2] sm:$0x1]
    %v70 = vlaneseq
    %v71 = vshrl.u32 %v70, 7
    %v72 = vsub.s32 0, %v71
    %v73 = vrot.slane %v68, %v72
    %vm75 = vcmask 261120
    %v77 = vsel %vm75, %v62, 0
    %v80 = vsel %vm75, %v63, 0
    %82 = vmatprep.subr.mxu0 0.0
    %83 = vmatpush1.msra.mxu0 %v64
    %84 = vmatprep.subr.mxu0 0.0
    %85 = vmatpush1.msra.mxu0 %v65
    %86 = vmatprep.subr.mxu0 0.0
    %87 = vmatpush1.msra.mxu0 %v66
    %88 = vmatprep.subr.mxu0 0.0
    %89 = vmatpush1.msra.mxu0 %v67
    %90 = vmatprep.subr.mxu0 0.0
    %91 = vmatpush1.msra.mxu0 0.0
    %92 = vmatprep.subr.mxu0 0.0
    %93 = vmatpush1.msra.mxu0 0.0
    %94 = vmatprep.subr.mxu0 0.0
    %95 = vmatpush1.msra.mxu0 0.0
    %96 = vmatprep.subr.mxu0 0.0
    %97 = vmatpush1.msra.mxu0 0.0
    %98 = vmatprep.subr.mxu0 0.0
    %99 = vmatpush1.msra.mxu0 0.0
    %100 = vmatprep.subr.mxu0 0.0
    %101 = vmatpush1.msra.mxu0 0.0
    %102 = vmatprep.subr.mxu0 0.0
    %103 = vmatpush1.msra.mxu0 0.0
    %104 = vmatprep.subr.mxu0 0.0
    %105 = vmatpush1.msra.mxu0 0.0
    %106 = vmatprep.subr.mxu0 0.0
    %107 = vmatpush1.msra.mxu0 0.0
    %108 = vmatprep.subr.mxu0 0.0
    %109 = vmatpush1.msra.mxu0 0.0
    %110 = vmatprep.subr.mxu0 0.0
    %111 = vmatpush1.msra.mxu0 0.0
    %112 = vmatprep.subr.mxu0 0.0
    %113 = vmatpush1.msra.mxu0 0.0
    %114 = vmatprep.subr.mxu0 0.0
    %115 = vmatpush1.msra.mxu0 0.0
    %116 = vmatprep.subr.mxu0 0.0
    %117 = vmatpush1.msra.mxu0 0.0
    %118 = vmatprep.subr.mxu0 0.0
    %119 = vmatpush1.msra.mxu0 0.0
    %120 = vmatprep.subr.mxu0 0.0
    %121 = vmatpush1.msra.mxu0 0.0
    %122 = vmatprep.subr.mxu0 0.0
    %123 = vmatpush1.msra.mxu0 0.0
    %124 = vmatprep.subr.mxu0 0.0
    %125 = vmatpush1.msra.mxu0 0.0
    %126 = vmatprep.subr.mxu0 0.0
    %127 = vmatpush1.msra.mxu0 0.0
    %128 = vmatprep.subr.mxu0 0.0
    %129 = vmatpush1.msra.mxu0 0.0
    %130 = vmatprep.subr.mxu0 0.0
    %131 = vmatpush1.msra.mxu0 0.0
    %132 = vmatprep.subr.mxu0 0.0
    %133 = vmatpush1.msra.mxu0 0.0
    %134 = vmatprep.subr.mxu0 0.0
    %135 = vmatpush1.msra.mxu0 0.0
    %136 = vmatprep.subr.mxu0 0.0
    %137 = vmatpush1.msra.mxu0 0.0
    %138 = vmatprep.subr.mxu0 0.0
    %139 = vmatpush1.msra.mxu0 0.0
    %140 = vmatprep.subr.mxu0 0.0
    %141 = vmatpush1.msra.mxu0 0.0
    %142 = vmatprep.subr.mxu0 0.0
    %143 = vmatpush1.msra.mxu0 0.0
    %144 = vmatprep.subr.mxu0 0.0
    %145 = vmatpush1.msra.mxu0 0.0
    %146 = vmatprep.mubr.f32.mxu0 0.0
    %147 = vmatmul.mubr.f32.gmra.mrb[0].mxu0 %v77
    %v148 = vpop.f32.mrb[0].mxu0
    %v149 = vadd.f32 %v73, %v148
    %v150 = vpop.f32.mrb[0].mxu0
    %151 = vmatprep.mubr.f32.mxu0 0.0
    %152 = vmatmul.mubr.f32.gmra.mrb[0].mxu0 %v80
    %v153 = vpop.f32.mrb[0].mxu0
    %v154 = vadd.f32 %v73, %v153
    %v155 = vpop.f32.mrb[0].mxu0
    %156 = vdwg.mxu0
    %v157 = vmul.f32 %v149, 0.35355338
    %v158 = vmul.f32 %v154, 0.35355338
    %160 = vrot.lane.b32.xlu0 %v149, 96
    %v161 = vpop.permute.xlu0 %160
    %vm162 = vcmask 64512
    %v164 = vsel %vm162, %v157, 0
    %v166 = vsel %vm162, %v161, 0
    %168 = vmatprep.subr.mxu0 0.0
    %169 = vmatpush1.xpose.msra.mxu0 %v166
    %170 = vmatprep.subr.mxu0 0.0
    %171 = vmatpush1.xpose.msra.mxu0 0.0
    %172 = vmatprep.subr.mxu0 0.0
    %173 = vmatpush1.xpose.msra.mxu0 0.0
    %174 = vmatprep.subr.mxu0 0.0
    %175 = vmatpush1.xpose.msra.mxu0 0.0
    %176 = vmatprep.subr.mxu0 0.0
    %177 = vmatpush1.xpose.msra.mxu0 0.0
    %178 = vmatprep.subr.mxu0 0.0
    %179 = vmatpush1.xpose.msra.mxu0 0.0
    %180 = vmatprep.subr.mxu0 0.0
    %181 = vmatpush1.xpose.msra.mxu0 0.0
    %182 = vmatprep.subr.mxu0 0.0
    %183 = vmatpush1.xpose.msra.mxu0 0.0
    %184 = vmatprep.subr.mxu0 0.0
    %185 = vmatpush1.xpose.msra.mxu0 0.0
    %186 = vmatprep.subr.mxu0 0.0
    %187 = vmatpush1.xpose.msra.mxu0 0.0
    %188 = vmatprep.subr.mxu0 0.0
    %189 = vmatpush1.xpose.msra.mxu0 0.0
    %190 = vmatprep.subr.mxu0 0.0
    %191 = vmatpush1.xpose.msra.mxu0 0.0
    %192 = vmatprep.subr.mxu0 0.0
    %193 = vmatpush1.xpose.msra.mxu0 0.0
    %194 = vmatprep.subr.mxu0 0.0
    %195 = vmatpush1.xpose.msra.mxu0 0.0
    %196 = vmatprep.subr.mxu0 0.0
    %197 = vmatpush1.xpose.msra.mxu0 0.0
    %198 = vmatprep.subr.mxu0 0.0
    %199 = vmatpush1.xpose.msra.mxu0 0.0
    %200 = vmatprep.subr.mxu0 0.0
    %201 = vmatpush1.xpose.msra.mxu0 0.0
    %202 = vmatprep.subr.mxu0 0.0
    %203 = vmatpush1.xpose.msra.mxu0 0.0
    %204 = vmatprep.subr.mxu0 0.0
    %205 = vmatpush1.xpose.msra.mxu0 0.0
    %206 = vmatprep.subr.mxu0 0.0
    %207 = vmatpush1.xpose.msra.mxu0 0.0
    %208 = vmatprep.subr.mxu0 0.0
    %209 = vmatpush1.xpose.msra.mxu0 0.0
    %210 = vmatprep.subr.mxu0 0.0
    %211 = vmatpush1.xpose.msra.mxu0 0.0
    %212 = vmatprep.subr.mxu0 0.0
    %213 = vmatpush1.xpose.msra.mxu0 0.0
    %214 = vmatprep.subr.mxu0 0.0
    %215 = vmatpush1.xpose.msra.mxu0 0.0
    %216 = vmatprep.subr.mxu0 0.0
    %217 = vmatpush1.xpose.msra.mxu0 0.0
    %218 = vmatprep.subr.mxu0 0.0
    %219 = vmatpush1.xpose.msra.mxu0 0.0
    %220 = vmatprep.subr.mxu0 0.0
    %221 = vmatpush1.xpose.msra.mxu0 0.0
    %222 = vmatprep.subr.mxu0 0.0
    %223 = vmatpush1.xpose.msra.mxu0 0.0
    %224 = vmatprep.subr.mxu0 0.0
    %225 = vmatpush1.xpose.msra.mxu0 0.0
    %226 = vmatprep.subr.mxu0 0.0
    %227 = vmatpush1.xpose.msra.mxu0 0.0
    %228 = vmatprep.subr.mxu0 0.0
    %229 = vmatpush1.xpose.msra.mxu0 0.0
    %230 = vmatprep.subr.mxu0 0.0
    %231 = vmatpush1.xpose.msra.mxu0 0.0
    %232 = vmatprep.mubr.f32.mxu0 0.0
    %233 = vmatmul.mubr.f32.gmra.mrb[0].mxu0 %v164
    %v234 = vpop.f32.mrb[0].mxu0
    %v235 = vadd.f32 0.0, %v234
    %v236 = vpop.f32.mrb[0].mxu0
    %237 = vdwg.mxu0
    %238 = vrot.lane.b32.xlu0 %v157, 120
    %v239 = vpop.permute.xlu0 %238
    %240 = vrot.lane.b32.xlu0 %v149, 88
    %v241 = vpop.permute.xlu0 %240
    %v242 = vsel %vm162, %v239, 0
    %v244 = vsel %vm162, %v241, 0
    %246 = vmatprep.subr.mxu0 0.0
    %247 = vmatpush1.xpose.msra.mxu0 %v244
    %248 = vmatprep.subr.mxu0 0.0
    %249 = vmatpush1.xpose.msra.mxu0 0.0
    %250 = vmatprep.subr.mxu0 0.0
    %251 = vmatpush1.xpose.msra.mxu0 0.0
    %252 = vmatprep.subr.mxu0 0.0
    %253 = vmatpush1.xpose.msra.mxu0 0.0
    %254 = vmatprep.subr.mxu0 0.0
    %255 = vmatpush1.xpose.msra.mxu0 0.0
    %256 = vmatprep.subr.mxu0 0.0
    %257 = vmatpush1.xpose.msra.mxu0 0.0
    %258 = vmatprep.subr.mxu0 0.0
    %259 = vmatpush1.xpose.msra.mxu0 0.0
    %260 = vmatprep.subr.mxu0 0.0
    %261 = vmatpush1.xpose.msra.mxu0 0.0
    %262 = vmatprep.subr.mxu0 0.0
    %263 = vmatpush1.xpose.msra.mxu0 0.0
    %264 = vmatprep.subr.mxu0 0.0
    %265 = vmatpush1.xpose.msra.mxu0 0.0
    %266 = vmatprep.subr.mxu0 0.0
    %267 = vmatpush1.xpose.msra.mxu0 0.0
    %268 = vmatprep.subr.mxu0 0.0
    %269 = vmatpush1.xpose.msra.mxu0 0.0
    %270 = vmatprep.subr.mxu0 0.0
    %271 = vmatpush1.xpose.msra.mxu0 0.0
    %272 = vmatprep.subr.mxu0 0.0
    %273 = vmatpush1.xpose.msra.mxu0 0.0
    %274 = vmatprep.subr.mxu0 0.0
    %275 = vmatpush1.xpose.msra.mxu0 0.0
    %276 = vmatprep.subr.mxu0 0.0
    %277 = vmatpush1.xpose.msra.mxu0 0.0
    %278 = vmatprep.subr.mxu0 0.0
    %279 = vmatpush1.xpose.msra.mxu0 0.0
    %280 = vmatprep.subr.mxu0 0.0
    %281 = vmatpush1.xpose.msra.mxu0 0.0
    %282 = vmatprep.subr.mxu0 0.0
    %283 = vmatpush1.xpose.msra.mxu0 0.0
    %284 = vmatprep.subr.mxu0 0.0
    %285 = vmatpush1.xpose.msra.mxu0 0.0
    %286 = vmatprep.subr.mxu0 0.0
    %287 = vmatpush1.xpose.msra.mxu0 0.0
    %288 = vmatprep.subr.mxu0 0.0
    %289 = vmatpush1.xpose.msra.mxu0 0.0
    %290 = vmatprep.subr.mxu0 0.0
    %291 = vmatpush1.xpose.msra.mxu0 0.0
    %292 = vmatprep.subr.mxu0 0.0
    %293 = vmatpush1.xpose.msra.mxu0 0.0
    %294 = vmatprep.subr.mxu0 0.0
    %295 = vmatpush1.xpose.msra.mxu0 0.0
    %296 = vmatprep.subr.mxu0 0.0
    %297 = vmatpush1.xpose.msra.mxu0 0.0
    %298 = vmatprep.subr.mxu0 0.0
    %299 = vmatpush1.xpose.msra.mxu0 0.0
    %300 = vmatprep.subr.mxu0 0.0
    %301 = vmatpush1.xpose.msra.mxu0 0.0
    %302 = vmatprep.subr.mxu0 0.0
    %303 = vmatpush1.xpose.msra.mxu0 0.0
    %304 = vmatprep.subr.mxu0 0.0
    %305 = vmatpush1.xpose.msra.mxu0 0.0
    %306 = vmatprep.subr.mxu0 0.0
    %307 = vmatpush1.xpose.msra.mxu0 0.0
    %308 = vmatprep.subr.mxu0 0.0
    %309 = vmatpush1.xpose.msra.mxu0 0.0
    %310 = vmatprep.mubr.f32.mxu0 0.0
    %311 = vmatmul.mubr.f32.gmra.mrb[0].mxu0 %v242
    %v312 = vpop.f32.mrb[0].mxu0
    %v313 = vadd.f32 0.0, %v312
    %v314 = vpop.f32.mrb[0].mxu0
    %315 = vdwg.mxu0
    %316 = vrot.lane.b32.xlu0 %v157, 112
    %v317 = vpop.permute.xlu0 %316
    %318 = vrot.lane.b32.xlu0 %v149, 80
    %v319 = vpop.permute.xlu0 %318
    %v320 = vsel %vm162, %v317, 0
    %v322 = vsel %vm162, %v319, 0
    %324 = vmatprep.subr.mxu0 0.0
    %325 = vmatpush1.xpose.msra.mxu0 %v322
    %326 = vmatprep.subr.mxu0 0.0
    %327 = vmatpush1.xpose.msra.mxu0 0.0
    %328 = vmatprep.subr.mxu0 0.0
    %329 = vmatpush1.xpose.msra.mxu0 0.0
    %330 = vmatprep.subr.mxu0 0.0
    %331 = vmatpush1.xpose.msra.mxu0 0.0
    %332 = vmatprep.subr.mxu0 0.0
    %333 = vmatpush1.xpose.msra.mxu0 0.0
    %334 = vmatprep.subr.mxu0 0.0
    %335 = vmatpush1.xpose.msra.mxu0 0.0
    %336 = vmatprep.subr.mxu0 0.0
    %337 = vmatpush1.xpose.msra.mxu0 0.0
    %338 = vmatprep.subr.mxu0 0.0
    %339 = vmatpush1.xpose.msra.mxu0 0.0
    %340 = vmatprep.subr.mxu0 0.0
    %341 = vmatpush1.xpose.msra.mxu0 0.0
    %342 = vmatprep.subr.mxu0 0.0
    %343 = vmatpush1.xpose.msra.mxu0 0.0
    %344 = vmatprep.subr.mxu0 0.0
    %345 = vmatpush1.xpose.msra.mxu0 0.0
    %346 = vmatprep.subr.mxu0 0.0
    %347 = vmatpush1.xpose.msra.mxu0 0.0
    %348 = vmatprep.subr.mxu0 0.0
    %349 = vmatpush1.xpose.msra.mxu0 0.0
    %350 = vmatprep.subr.mxu0 0.0
    %351 = vmatpush1.xpose.msra.mxu0 0.0
    %352 = vmatprep.subr.mxu0 0.0
    %353 = vmatpush1.xpose.msra.mxu0 0.0
    %354 = vmatprep.subr.mxu0 0.0
    %355 = vmatpush1.xpose.msra.mxu0 0.0
    %356 = vmatprep.subr.mxu0 0.0
    %357 = vmatpush1.xpose.msra.mxu0 0.0
    %358 = vmatprep.subr.mxu0 0.0
    %359 = vmatpush1.xpose.msra.mxu0 0.0
    %360 = vmatprep.subr.mxu0 0.0
    %361 = vmatpush1.xpose.msra.mxu0 0.0
    %362 = vmatprep.subr.mxu0 0.0
    %363 = vmatpush1.xpose.msra.mxu0 0.0
    %364 = vmatprep.subr.mxu0 0.0
    %365 = vmatpush1.xpose.msra.mxu0 0.0
    %366 = vmatprep.subr.mxu0 0.0
    %367 = vmatpush1.xpose.msra.mxu0 0.0
    %368 = vmatprep.subr.mxu0 0.0
    %369 = vmatpush1.xpose.msra.mxu0 0.0
    %370 = vmatprep.subr.mxu0 0.0
    %371 = vmatpush1.xpose.msra.mxu0 0.0
    %372 = vmatprep.subr.mxu0 0.0
    %373 = vmatpush1.xpose.msra.mxu0 0.0
    %374 = vmatprep.subr.mxu0 0.0
    %375 = vmatpush1.xpose.msra.mxu0 0.0
    %376 = vmatprep.subr.mxu0 0.0
    %377 = vmatpush1.xpose.msra.mxu0 0.0
    %378 = vmatprep.subr.mxu0 0.0
    %379 = vmatpush1.xpose.msra.mxu0 0.0
    %380 = vmatprep.subr.mxu0 0.0
    %381 = vmatpush1.xpose.msra.mxu0 0.0
    %382 = vmatprep.subr.mxu0 0.0
    %383 = vmatpush1.xpose.msra.mxu0 0.0
    %384 = vmatprep.subr.mxu0 0.0
    %385 = vmatpush1.xpose.msra.mxu0 0.0
    %386 = vmatprep.subr.mxu0 0.0
    %387 = vmatpush1.xpose.msra.mxu0 0.0
    %388 = vmatprep.mubr.f32.mxu0 0.0
    %389 = vmatmul.mubr.f32.gmra.mrb[0].mxu0 %v320
    %v390 = vpop.f32.mrb[0].mxu0
    %v391 = vadd.f32 0.0, %v390
    %v392 = vpop.f32.mrb[0].mxu0
    %393 = vdwg.mxu0
    %394 = vrot.lane.b32.xlu0 %v157, 104
    %v395 = vpop.permute.xlu0 %394
    %396 = vrot.lane.b32.xlu0 %v149, 72
    %v397 = vpop.permute.xlu0 %396
    %v398 = vsel %vm162, %v395, 0
    %v400 = vsel %vm162, %v397, 0
    %402 = vmatprep.subr.mxu0 0.0
    %403 = vmatpush1.xpose.msra.mxu0 %v400
    %404 = vmatprep.subr.mxu0 0.0
    %405 = vmatpush1.xpose.msra.mxu0 0.0
    %406 = vmatprep.subr.mxu0 0.0
    %407 = vmatpush1.xpose.msra.mxu0 0.0
    %408 = vmatprep.subr.mxu0 0.0
    %409 = vmatpush1.xpose.msra.mxu0 0.0
    %410 = vmatprep.subr.mxu0 0.0
    %411 = vmatpush1.xpose.msra.mxu0 0.0
    %412 = vmatprep.subr.mxu0 0.0
    %413 = vmatpush1.xpose.msra.mxu0 0.0
    %414 = vmatprep.subr.mxu0 0.0
    %415 = vmatpush1.xpose.msra.mxu0 0.0
    %416 = vmatprep.subr.mxu0 0.0
    %417 = vmatpush1.xpose.msra.mxu0 0.0
    %418 = vmatprep.subr.mxu0 0.0
    %419 = vmatpush1.xpose.msra.mxu0 0.0
    %420 = vmatprep.subr.mxu0 0.0
    %421 = vmatpush1.xpose.msra.mxu0 0.0
    %422 = vmatprep.subr.mxu0 0.0
    %423 = vmatpush1.xpose.msra.mxu0 0.0
    %424 = vmatprep.subr.mxu0 0.0
    %425 = vmatpush1.xpose.msra.mxu0 0.0
    %426 = vmatprep.subr.mxu0 0.0
    %427 = vmatpush1.xpose.msra.mxu0 0.0
    %428 = vmatprep.subr.mxu0 0.0
    %429 = vmatpush1.xpose.msra.mxu0 0.0
    %430 = vmatprep.subr.mxu0 0.0
    %431 = vmatpush1.xpose.msra.mxu0 0.0
    %432 = vmatprep.subr.mxu0 0.0
    %433 = vmatpush1.xpose.msra.mxu0 0.0
    %434 = vmatprep.subr.mxu0 0.0
    %435 = vmatpush1.xpose.msra.mxu0 0.0
    %436 = vmatprep.subr.mxu0 0.0
    %437 = vmatpush1.xpose.msra.mxu0 0.0
    %438 = vmatprep.subr.mxu0 0.0
    %439 = vmatpush1.xpose.msra.mxu0 0.0
    %440 = vmatprep.subr.mxu0 0.0
    %441 = vmatpush1.xpose.msra.mxu0 0.0
    %442 = vmatprep.subr.mxu0 0.0
    %443 = vmatpush1.xpose.msra.mxu0 0.0
    %444 = vmatprep.subr.mxu0 0.0
    %445 = vmatpush1.xpose.msra.mxu0 0.0
    %446 = vmatprep.subr.mxu0 0.0
    %447 = vmatpush1.xpose.msra.mxu0 0.0
    %448 = vmatprep.subr.mxu0 0.0
    %449 = vmatpush1.xpose.msra.mxu0 0.0
    %450 = vmatprep.subr.mxu0 0.0
    %451 = vmatpush1.xpose.msra.mxu0 0.0
    %452 = vmatprep.subr.mxu0 0.0
    %453 = vmatpush1.xpose.msra.mxu0 0.0
    %454 = vmatprep.subr.mxu0 0.0
    %455 = vmatpush1.xpose.msra.mxu0 0.0
    %456 = vmatprep.subr.mxu0 0.0
    %457 = vmatpush1.xpose.msra.mxu0 0.0
    %458 = vmatprep.subr.mxu0 0.0
    %459 = vmatpush1.xpose.msra.mxu0 0.0
    %460 = vmatprep.subr.mxu0 0.0
    %461 = vmatpush1.xpose.msra.mxu0 0.0
    %462 = vmatprep.subr.mxu0 0.0
    %463 = vmatpush1.xpose.msra.mxu0 0.0
    %464 = vmatprep.subr.mxu0 0.0
    %465 = vmatpush1.xpose.msra.mxu0 0.0
    %466 = vmatprep.mubr.f32.mxu0 0.0
    %467 = vmatmul.mubr.f32.gmra.mrb[0].mxu0 %v398
    %v468 = vpop.f32.mrb[0].mxu0
    %v469 = vadd.f32 0.0, %v468
    %v470 = vpop.f32.mrb[0].mxu0
    %471 = vdwg.mxu0
    %473 = vrot.lane.b32.xlu0 %v154, 96
    %v474 = vpop.permute.xlu0 %473
    %v476 = vsel %vm162, %v158, 0
    %v478 = vsel %vm162, %v474, 0
    %480 = vmatprep.subr.mxu0 0.0
    %481 = vmatpush1.xpose.msra.mxu0 %v478
    %482 = vmatprep.subr.mxu0 0.0
    %483 = vmatpush1.xpose.msra.mxu0 0.0
    %484 = vmatprep.subr.mxu0 0.0
    %485 = vmatpush1.xpose.msra.mxu0 0.0
    %486 = vmatprep.subr.mxu0 0.0
    %487 = vmatpush1.xpose.msra.mxu0 0.0
    %488 = vmatprep.subr.mxu0 0.0
    %489 = vmatpush1.xpose.msra.mxu0 0.0
    %490 = vmatprep.subr.mxu0 0.0
    %491 = vmatpush1.xpose.msra.mxu0 0.0
    %492 = vmatprep.subr.mxu0 0.0
    %493 = vmatpush1.xpose.msra.mxu0 0.0
    %494 = vmatprep.subr.mxu0 0.0
    %495 = vmatpush1.xpose.msra.mxu0 0.0
    %496 = vmatprep.subr.mxu0 0.0
    %497 = vmatpush1.xpose.msra.mxu0 0.0
    %498 = vmatprep.subr.mxu0 0.0
    %499 = vmatpush1.xpose.msra.mxu0 0.0
    %500 = vmatprep.subr.mxu0 0.0
    %501 = vmatpush1.xpose.msra.mxu0 0.0
    %502 = vmatprep.subr.mxu0 0.0
    %503 = vmatpush1.xpose.msra.mxu0 0.0
    %504 = vmatprep.subr.mxu0 0.0
    %505 = vmatpush1.xpose.msra.mxu0 0.0
    %506 = vmatprep.subr.mxu0 0.0
    %507 = vmatpush1.xpose.msra.mxu0 0.0
    %508 = vmatprep.subr.mxu0 0.0
    %509 = vmatpush1.xpose.msra.mxu0 0.0
    %510 = vmatprep.subr.mxu0 0.0
    %511 = vmatpush1.xpose.msra.mxu0 0.0
    %512 = vmatprep.subr.mxu0 0.0
    %513 = vmatpush1.xpose.msra.mxu0 0.0
    %514 = vmatprep.subr.mxu0 0.0
    %515 = vmatpush1.xpose.msra.mxu0 0.0
    %516 = vmatprep.subr.mxu0 0.0
    %517 = vmatpush1.xpose.msra.mxu0 0.0
    %518 = vmatprep.subr.mxu0 0.0
    %519 = vmatpush1.xpose.msra.mxu0 0.0
    %520 = vmatprep.subr.mxu0 0.0
    %521 = vmatpush1.xpose.msra.mxu0 0.0
    %522 = vmatprep.subr.mxu0 0.0
    %523 = vmatpush1.xpose.msra.mxu0 0.0
    %524 = vmatprep.subr.mxu0 0.0
    %525 = vmatpush1.xpose.msra.mxu0 0.0
    %526 = vmatprep.subr.mxu0 0.0
    %527 = vmatpush1.xpose.msra.mxu0 0.0
    %528 = vmatprep.subr.mxu0 0.0
    %529 = vmatpush1.xpose.msra.mxu0 0.0
    %530 = vmatprep.subr.mxu0 0.0
    %531 = vmatpush1.xpose.msra.mxu0 0.0
    %532 = vmatprep.subr.mxu0 0.0
    %533 = vmatpush1.xpose.msra.mxu0 0.0
    %534 = vmatprep.subr.mxu0 0.0
    %535 = vmatpush1.xpose.msra.mxu0 0.0
    %536 = vmatprep.subr.mxu0 0.0
    %537 = vmatpush1.xpose.msra.mxu0 0.0
    %538 = vmatprep.subr.mxu0 0.0
    %539 = vmatpush1.xpose.msra.mxu0 0.0
    %540 = vmatprep.subr.mxu0 0.0
    %541 = vmatpush1.xpose.msra.mxu0 0.0
    %542 = vmatprep.subr.mxu0 0.0
    %543 = vmatpush1.xpose.msra.mxu0 0.0
    %544 = vmatprep.mubr.f32.mxu0 0.0
    %545 = vmatmul.mubr.f32.gmra.mrb[0].mxu0 %v476
    %v546 = vpop.f32.mrb[0].mxu0
    %v547 = vadd.f32 0.0, %v546
    %v548 = vpop.f32.mrb[0].mxu0
    %549 = vdwg.mxu0
    %550 = vrot.lane.b32.xlu0 %v158, 120
    %v551 = vpop.permute.xlu0 %550
    %552 = vrot.lane.b32.xlu0 %v154, 88
    %v553 = vpop.permute.xlu0 %552
    %v554 = vsel %vm162, %v551, 0
    %v556 = vsel %vm162, %v553, 0
    %558 = vmatprep.subr.mxu0 0.0
    %559 = vmatpush1.xpose.msra.mxu0 %v556
    %560 = vmatprep.subr.mxu0 0.0
    %561 = vmatpush1.xpose.msra.mxu0 0.0
    %562 = vmatprep.subr.mxu0 0.0
    %563 = vmatpush1.xpose.msra.mxu0 0.0
    %564 = vmatprep.subr.mxu0 0.0
    %565 = vmatpush1.xpose.msra.mxu0 0.0
    %566 = vmatprep.subr.mxu0 0.0
    %567 = vmatpush1.xpose.msra.mxu0 0.0
    %568 = vmatprep.subr.mxu0 0.0
    %569 = vmatpush1.xpose.msra.mxu0 0.0
    %570 = vmatprep.subr.mxu0 0.0
    %571 = vmatpush1.xpose.msra.mxu0 0.0
    %572 = vmatprep.subr.mxu0 0.0
    %573 = vmatpush1.xpose.msra.mxu0 0.0
    %574 = vmatprep.subr.mxu0 0.0
    %575 = vmatpush1.xpose.msra.mxu0 0.0
    %576 = vmatprep.subr.mxu0 0.0
    %577 = vmatpush1.xpose.msra.mxu0 0.0
    %578 = vmatprep.subr.mxu0 0.0
    %579 = vmatpush1.xpose.msra.mxu0 0.0
    %580 = vmatprep.subr.mxu0 0.0
    %581 = vmatpush1.xpose.msra.mxu0 0.0
    %582 = vmatprep.subr.mxu0 0.0
    %583 = vmatpush1.xpose.msra.mxu0 0.0
    %584 = vmatprep.subr.mxu0 0.0
    %585 = vmatpush1.xpose.msra.mxu0 0.0
    %586 = vmatprep.subr.mxu0 0.0
    %587 = vmatpush1.xpose.msra.mxu0 0.0
    %588 = vmatprep.subr.mxu0 0.0
    %589 = vmatpush1.xpose.msra.mxu0 0.0
    %590 = vmatprep.subr.mxu0 0.0
    %591 = vmatpush1.xpose.msra.mxu0 0.0
    %592 = vmatprep.subr.mxu0 0.0
    %593 = vmatpush1.xpose.msra.mxu0 0.0
    %594 = vmatprep.subr.mxu0 0.0
    %595 = vmatpush1.xpose.msra.mxu0 0.0
    %596 = vmatprep.subr.mxu0 0.0
    %597 = vmatpush1.xpose.msra.mxu0 0.0
    %598 = vmatprep.subr.mxu0 0.0
    %599 = vmatpush1.xpose.msra.mxu0 0.0
    %600 = vmatprep.subr.mxu0 0.0
    %601 = vmatpush1.xpose.msra.mxu0 0.0
    %602 = vmatprep.subr.mxu0 0.0
    %603 = vmatpush1.xpose.msra.mxu0 0.0
    %604 = vmatprep.subr.mxu0 0.0
    %605 = vmatpush1.xpose.msra.mxu0 0.0
    %606 = vmatprep.subr.mxu0 0.0
    %607 = vmatpush1.xpose.msra.mxu0 0.0
    %608 = vmatprep.subr.mxu0 0.0
    %609 = vmatpush1.xpose.msra.mxu0 0.0
    %610 = vmatprep.subr.mxu0 0.0
    %611 = vmatpush1.xpose.msra.mxu0 0.0
    %612 = vmatprep.subr.mxu0 0.0
    %613 = vmatpush1.xpose.msra.mxu0 0.0
    %614 = vmatprep.subr.mxu0 0.0
    %615 = vmatpush1.xpose.msra.mxu0 0.0
    %616 = vmatprep.subr.mxu0 0.0
    %617 = vmatpush1.xpose.msra.mxu0 0.0
    %618 = vmatprep.subr.mxu0 0.0
    %619 = vmatpush1.xpose.msra.mxu0 0.0
    %620 = vmatprep.subr.mxu0 0.0
    %621 = vmatpush1.xpose.msra.mxu0 0.0
    %622 = vmatprep.mubr.f32.mxu0 0.0
    %623 = vmatmul.mubr.f32.gmra.mrb[0].mxu0 %v554
    %v624 = vpop.f32.mrb[0].mxu0
    %v625 = vadd.f32 0.0, %v624
    %v626 = vpop.f32.mrb[0].mxu0
    %627 = vdwg.mxu0
    %628 = vrot.lane.b32.xlu0 %v158, 112
    %v629 = vpop.permute.xlu0 %628
    %630 = vrot.lane.b32.xlu0 %v154, 80
    %v631 = vpop.permute.xlu0 %630
    %v632 = vsel %vm162, %v629, 0
    %v634 = vsel %vm162, %v631, 0
    %636 = vmatprep.subr.mxu0 0.0
    %637 = vmatpush1.xpose.msra.mxu0 %v634
    %638 = vmatprep.subr.mxu0 0.0
    %639 = vmatpush1.xpose.msra.mxu0 0.0
    %640 = vmatprep.subr.mxu0 0.0
    %641 = vmatpush1.xpose.msra.mxu0 0.0
    %642 = vmatprep.subr.mxu0 0.0
    %643 = vmatpush1.xpose.msra.mxu0 0.0
    %644 = vmatprep.subr.mxu0 0.0
    %645 = vmatpush1.xpose.msra.mxu0 0.0
    %646 = vmatprep.subr.mxu0 0.0
    %647 = vmatpush1.xpose.msra.mxu0 0.0
    %648 = vmatprep.subr.mxu0 0.0
    %649 = vmatpush1.xpose.msra.mxu0 0.0
    %650 = vmatprep.subr.mxu0 0.0
    %651 = vmatpush1.xpose.msra.mxu0 0.0
    %652 = vmatprep.subr.mxu0 0.0
    %653 = vmatpush1.xpose.msra.mxu0 0.0
    %654 = vmatprep.subr.mxu0 0.0
    %655 = vmatpush1.xpose.msra.mxu0 0.0
    %656 = vmatprep.subr.mxu0 0.0
    %657 = vmatpush1.xpose.msra.mxu0 0.0
    %658 = vmatprep.subr.mxu0 0.0
    %659 = vmatpush1.xpose.msra.mxu0 0.0
    %660 = vmatprep.subr.mxu0 0.0
    %661 = vmatpush1.xpose.msra.mxu0 0.0
    %662 = vmatprep.subr.mxu0 0.0
    %663 = vmatpush1.xpose.msra.mxu0 0.0
    %664 = vmatprep.subr.mxu0 0.0
    %665 = vmatpush1.xpose.msra.mxu0 0.0
    %666 = vmatprep.subr.mxu0 0.0
    %667 = vmatpush1.xpose.msra.mxu0 0.0
    %668 = vmatprep.subr.mxu0 0.0
    %669 = vmatpush1.xpose.msra.mxu0 0.0
    %670 = vmatprep.subr.mxu0 0.0
    %671 = vmatpush1.xpose.msra.mxu0 0.0
    %672 = vmatprep.subr.mxu0 0.0
    %673 = vmatpush1.xpose.msra.mxu0 0.0
    %674 = vmatprep.subr.mxu0 0.0
    %675 = vmatpush1.xpose.msra.mxu0 0.0
    %676 = vmatprep.subr.mxu0 0.0
    %677 = vmatpush1.xpose.msra.mxu0 0.0
    %678 = vmatprep.subr.mxu0 0.0
    %679 = vmatpush1.xpose.msra.mxu0 0.0
    %680 = vmatprep.subr.mxu0 0.0
    %681 = vmatpush1.xpose.msra.mxu0 0.0
    %682 = vmatprep.subr.mxu0 0.0
    %683 = vmatpush1.xpose.msra.mxu0 0.0
    %684 = vmatprep.subr.mxu0 0.0
    %685 = vmatpush1.xpose.msra.mxu0 0.0
    %686 = vmatprep.subr.mxu0 0.0
    %687 = vmatpush1.xpose.msra.mxu0 0.0
    %688 = vmatprep.subr.mxu0 0.0
    %689 = vmatpush1.xpose.msra.mxu0 0.0
    %690 = vmatprep.subr.mxu0 0.0
    %691 = vmatpush1.xpose.msra.mxu0 0.0
    %692 = vmatprep.subr.mxu0 0.0
    %693 = vmatpush1.xpose.msra.mxu0 0.0
    %694 = vmatprep.subr.mxu0 0.0
    %695 = vmatpush1.xpose.msra.mxu0 0.0
    %696 = vmatprep.subr.mxu0 0.0
    %697 = vmatpush1.xpose.msra.mxu0 0.0
    %698 = vmatprep.subr.mxu0 0.0
    %699 = vmatpush1.xpose.msra.mxu0 0.0
    %700 = vmatprep.mubr.f32.mxu0 0.0
    %701 = vmatmul.mubr.f32.gmra.mrb[0].mxu0 %v632
    %v702 = vpop.f32.mrb[0].mxu0
    %v703 = vadd.f32 0.0, %v702
    %v704 = vpop.f32.mrb[0].mxu0
    %705 = vdwg.mxu0
    %706 = vrot.lane.b32.xlu0 %v158, 104
    %v707 = vpop.permute.xlu0 %706
    %708 = vrot.lane.b32.xlu0 %v154, 72
    %v709 = vpop.permute.xlu0 %708
    %v710 = vsel %vm162, %v707, 0
    %v712 = vsel %vm162, %v709, 0
    %714 = vmatprep.subr.mxu0 0.0
    %715 = vmatpush1.xpose.msra.mxu0 %v712
    %716 = vmatprep.subr.mxu0 0.0
    %717 = vmatpush1.xpose.msra.mxu0 0.0
    %718 = vmatprep.subr.mxu0 0.0
    %719 = vmatpush1.xpose.msra.mxu0 0.0
    %720 = vmatprep.subr.mxu0 0.0
    %721 = vmatpush1.xpose.msra.mxu0 0.0
    %722 = vmatprep.subr.mxu0 0.0
    %723 = vmatpush1.xpose.msra.mxu0 0.0
    %724 = vmatprep.subr.mxu0 0.0
    %725 = vmatpush1.xpose.msra.mxu0 0.0
    %726 = vmatprep.subr.mxu0 0.0
    %727 = vmatpush1.xpose.msra.mxu0 0.0
    %728 = vmatprep.subr.mxu0 0.0
    %729 = vmatpush1.xpose.msra.mxu0 0.0
    %730 = vmatprep.subr.mxu0 0.0
    %731 = vmatpush1.xpose.msra.mxu0 0.0
    %732 = vmatprep.subr.mxu0 0.0
    %733 = vmatpush1.xpose.msra.mxu0 0.0
    %734 = vmatprep.subr.mxu0 0.0
    %735 = vmatpush1.xpose.msra.mxu0 0.0
    %736 = vmatprep.subr.mxu0 0.0
    %737 = vmatpush1.xpose.msra.mxu0 0.0
    %738 = vmatprep.subr.mxu0 0.0
    %739 = vmatpush1.xpose.msra.mxu0 0.0
    %740 = vmatprep.subr.mxu0 0.0
    %741 = vmatpush1.xpose.msra.mxu0 0.0
    %742 = vmatprep.subr.mxu0 0.0
    %743 = vmatpush1.xpose.msra.mxu0 0.0
    %744 = vmatprep.subr.mxu0 0.0
    %745 = vmatpush1.xpose.msra.mxu0 0.0
    %746 = vmatprep.subr.mxu0 0.0
    %747 = vmatpush1.xpose.msra.mxu0 0.0
    %748 = vmatprep.subr.mxu0 0.0
    %749 = vmatpush1.xpose.msra.mxu0 0.0
    %750 = vmatprep.subr.mxu0 0.0
    %751 = vmatpush1.xpose.msra.mxu0 0.0
    %752 = vmatprep.subr.mxu0 0.0
    %753 = vmatpush1.xpose.msra.mxu0 0.0
    %754 = vmatprep.subr.mxu0 0.0
    %755 = vmatpush1.xpose.msra.mxu0 0.0
    %756 = vmatprep.subr.mxu0 0.0
    %757 = vmatpush1.xpose.msra.mxu0 0.0
    %758 = vmatprep.subr.mxu0 0.0
    %759 = vmatpush1.xpose.msra.mxu0 0.0
    %760 = vmatprep.subr.mxu0 0.0
    %761 = vmatpush1.xpose.msra.mxu0 0.0
    %762 = vmatprep.subr.mxu0 0.0
    %763 = vmatpush1.xpose.msra.mxu0 0.0
    %764 = vmatprep.subr.mxu0 0.0
    %765 = vmatpush1.xpose.msra.mxu0 0.0
    %766 = vmatprep.subr.mxu0 0.0
    %767 = vmatpush1.xpose.msra.mxu0 0.0
    %768 = vmatprep.subr.mxu0 0.0
    %769 = vmatpush1.xpose.msra.mxu0 0.0
    %770 = vmatprep.subr.mxu0 0.0
    %771 = vmatpush1.xpose.msra.mxu0 0.0
    %772 = vmatprep.subr.mxu0 0.0
    %773 = vmatpush1.xpose.msra.mxu0 0.0
    %774 = vmatprep.subr.mxu0 0.0
    %775 = vmatpush1.xpose.msra.mxu0 0.0
    %776 = vmatprep.subr.mxu0 0.0
    %777 = vmatpush1.xpose.msra.mxu0 0.0
    %778 = vmatprep.mubr.f32.mxu0 0.0
    %779 = vmatmul.mubr.f32.gmra.mrb[0].mxu0 %v710
    %v780 = vpop.f32.mrb[0].mxu0
    %v781 = vadd.f32 0.0, %v780
    %v782 = vpop.f32.mrb[0].mxu0
    %783 = vdwg.mxu0
    %v784 = vlaneseq
    %v785 = vshrl.u32 %v784, 7
    %v786 = vadd.s32 %v785, 8
    %v787 = vadd.s32 %v785, 16
    %v788 = vadd.s32 %v785, 24
    %v789 = vadd.s32 %v785, 32
    %v790 = vadd.s32 %v785, 40
    %v791 = vadd.s32 %v785, 48
    %v792 = vadd.s32 %v785, 56
    %vm793 = vcmp.lt.s32.totalorder %v785, 0
    %v794 = vsub.s32 0, %v785
    %v795 = vsel %vm793, %v794, %v785
    %v796 = vshrl.u32 %v795, 3
    %v797 = vand.u32 %v795, 7
    %v798 = vsub.s32 0, %v797
    %v799 = vsel %vm793, %v798, %v797
    %vm800 = vcmp.lt.s32.totalorder %v786, 0
    %v801 = vsub.s32 0, %v786
    %v802 = vsel %vm800, %v801, %v786
    %v803 = vshrl.u32 %v802, 3
    %v804 = vand.u32 %v802, 7
    %v805 = vsub.s32 0, %v804
    %v806 = vsel %vm800, %v805, %v804
    %vm807 = vcmp.lt.s32.totalorder %v787, 0
    %v808 = vsub.s32 0, %v787
    %v809 = vsel %vm807, %v808, %v787
    %v810 = vshrl.u32 %v809, 3
    %v811 = vand.u32 %v809, 7
    %v812 = vsub.s32 0, %v811
    %v813 = vsel %vm807, %v812, %v811
    %vm814 = vcmp.lt.s32.totalorder %v788, 0
    %v815 = vsub.s32 0, %v788
    %v816 = vsel %vm814, %v815, %v788
    %v817 = vshrl.u32 %v816, 3
    %v818 = vand.u32 %v816, 7
    %v819 = vsub.s32 0, %v818
    %v820 = vsel %vm814, %v819, %v818
    %vm821 = vcmp.lt.s32.totalorder %v789, 0
    %v822 = vsub.s32 0, %v789
    %v823 = vsel %vm821, %v822, %v789
    %v824 = vshrl.u32 %v823, 3
    %v825 = vand.u32 %v823, 7
    %v826 = vsub.s32 0, %v825
    %v827 = vsel %vm821, %v826, %v825
    %vm828 = vcmp.lt.s32.totalorder %v790, 0
    %v829 = vsub.s32 0, %v790
    %v830 = vsel %vm828, %v829, %v790
    %v831 = vshrl.u32 %v830, 3
    %v832 = vand.u32 %v830, 7
    %v833 = vsub.s32 0, %v832
    %v834 = vsel %vm828, %v833, %v832
    %vm835 = vcmp.lt.s32.totalorder %v791, 0
    %v836 = vsub.s32 0, %v791
    %v837 = vsel %vm835, %v836, %v791
    %v838 = vshrl.u32 %v837, 3
    %v839 = vand.u32 %v837, 7
    %v840 = vsub.s32 0, %v839
    %v841 = vsel %vm835, %v840, %v839
    %vm842 = vcmp.lt.s32.totalorder %v792, 0
    %v843 = vsub.s32 0, %v792
    %v844 = vsel %vm842, %v843, %v792
    %v845 = vshrl.u32 %v844, 3
    %v846 = vand.u32 %v844, 7
    %v847 = vsub.s32 0, %v846
    %v848 = vsel %vm842, %v847, %v846
    %vm849 = vcmp.ne.s32.totalorder %v799, 0
    %vm850 = vcmp.ne.s32.totalorder %v806, 0
    %vm851 = vcmp.ne.s32.totalorder %v813, 0
    %vm852 = vcmp.ne.s32.totalorder %v820, 0
    %vm853 = vcmp.ne.s32.totalorder %v827, 0
    %vm854 = vcmp.ne.s32.totalorder %v834, 0
    %vm855 = vcmp.ne.s32.totalorder %v841, 0
    %vm856 = vcmp.ne.s32.totalorder %v848, 0
    %vm857 = vcmp.lt.s32.totalorder %v799, 0
    %vm858 = vcmp.lt.s32.totalorder %v806, 0
    %vm859 = vcmp.lt.s32.totalorder %v813, 0
    %vm860 = vcmp.lt.s32.totalorder %v820, 0
    %vm861 = vcmp.lt.s32.totalorder %v827, 0
    %vm862 = vcmp.lt.s32.totalorder %v834, 0
    %vm863 = vcmp.lt.s32.totalorder %v841, 0
    %vm864 = vcmp.lt.s32.totalorder %v848, 0
    %vm865 = vmand %vm857, %vm849
    %vm866 = vmand %vm858, %vm850
    %vm867 = vmand %vm859, %vm851
    %vm868 = vmand %vm860, %vm852
    %vm869 = vmand %vm861, %vm853
    %vm870 = vmand %vm862, %vm854
    %vm871 = vmand %vm863, %vm855
    %vm872 = vmand %vm864, %vm856
    %v873 = vadd.s32 %v799, 8
    %v874 = vadd.s32 %v806, 8
    %v875 = vadd.s32 %v813, 8
    %v876 = vadd.s32 %v820, 8
    %v877 = vadd.s32 %v827, 8
    %v878 = vadd.s32 %v834, 8
    %v879 = vadd.s32 %v841, 8
    %v880 = vadd.s32 %v848, 8
    %v881 = vsel %vm865, %v873, %v799
    %v882 = vsel %vm866, %v874, %v806
    %v883 = vsel %vm867, %v875, %v813
    %v884 = vsel %vm868, %v876, %v820
    %v885 = vsel %vm869, %v877, %v827
    %v886 = vsel %vm870, %v878, %v834
    %v887 = vsel %vm871, %v879, %v841
    %v888 = vsel %vm872, %v880, %v848
    %v889 = vlaneseq
    %v890 = vand.u32 %v889, 127
    %vm891 = vcmp.le.s32.totalorder %v890, %v881
    %vm892 = vcmp.le.s32.totalorder %v890, %v882
    %vm893 = vcmp.le.s32.totalorder %v890, %v883
    %vm894 = vcmp.le.s32.totalorder %v890, %v884
    %vm895 = vcmp.le.s32.totalorder %v890, %v885
    %vm896 = vcmp.le.s32.totalorder %v890, %v886
    %vm897 = vcmp.le.s32.totalorder %v890, %v887
    %vm898 = vcmp.le.s32.totalorder %v890, %v888
    %v899 = vsel %vm891, 0.0, -1e+30
    %v900 = vsel %vm892, 0.0, -1e+30
    %v901 = vsel %vm893, 0.0, -1e+30
    %v902 = vsel %vm894, 0.0, -1e+30
    %v903 = vsel %vm895, 0.0, -1e+30
    %v904 = vsel %vm896, 0.0, -1e+30
    %v905 = vsel %vm897, 0.0, -1e+30
    %v906 = vsel %vm898, 0.0, -1e+30
    %v907 = vadd.f32 %v235, %v899
    %v908 = vadd.f32 %v313, %v900
    %v909 = vadd.f32 %v391, %v901
    %v910 = vadd.f32 %v469, %v902
    %v911 = vadd.f32 %v547, %v903
    %v912 = vadd.f32 %v625, %v904
    %v913 = vadd.f32 %v703, %v905
    %v914 = vadd.f32 %v781, %v906
    %v915 = vsel %vm162, %v907, -inf
    %916 = vmax.xlane.f32.xlu0 %v915
    %v917 = vpop.xlane.xlu0 %916
    %v918 = vsel %vm162, %v908, -inf
    %919 = vmax.xlane.f32.xlu0 %v918
    %v920 = vpop.xlane.xlu0 %919
    %v921 = vsel %vm162, %v909, -inf
    %922 = vmax.xlane.f32.xlu0 %v921
    %v923 = vpop.xlane.xlu0 %922
    %v924 = vsel %vm162, %v910, -inf
    %925 = vmax.xlane.f32.xlu0 %v924
    %v926 = vpop.xlane.xlu0 %925
    %v927 = vsel %vm162, %v911, -inf
    %928 = vmax.xlane.f32.xlu0 %v927
    %v929 = vpop.xlane.xlu0 %928
    %v930 = vsel %vm162, %v912, -inf
    %931 = vmax.xlane.f32.xlu0 %v930
    %v932 = vpop.xlane.xlu0 %931
    %v933 = vsel %vm162, %v913, -inf
    %934 = vmax.xlane.f32.xlu0 %v933
    %v935 = vpop.xlane.xlu0 %934
    %v936 = vsel %vm162, %v914, -inf
    %937 = vmax.xlane.f32.xlu0 %v936
    %v938 = vpop.xlane.xlu0 %937
    %v939 = vsub.f32 %v907, %v917
    %v940 = vsub.f32 %v908, %v920
    %v941 = vsub.f32 %v909, %v923
    %v942 = vsub.f32 %v910, %v926
    %v943 = vsub.f32 %v911, %v929
    %v944 = vsub.f32 %v912, %v932
    %v945 = vsub.f32 %v913, %v935
    %v946 = vsub.f32 %v914, %v938
    %v947 = vmul.f32 %v939, 1.442695
    %v948 = vpow.pop %v947
    %v949 = vmul.f32 %v940, 1.442695
    %v950 = vpow.pop %v949
    %v951 = vmul.f32 %v941, 1.442695
    %v952 = vpow.pop %v951
    %v953 = vmul.f32 %v942, 1.442695
    %v954 = vpow.pop %v953
    %v955 = vmul.f32 %v943, 1.442695
    %v956 = vpow.pop %v955
    %v957 = vmul.f32 %v944, 1.442695
    %v958 = vpow.pop %v957
    %v959 = vmul.f32 %v945, 1.442695
    %v960 = vpow.pop %v959
    %v961 = vmul.f32 %v946, 1.442695
    %v962 = vpow.pop %v961
    %v963 = vsel %vm162, %v948, 0.0
    %964 = vadd.xlane.f32.xlu0 %v963
    %v965 = vpop.xlane.xlu0 %964
    %v966 = vsel %vm162, %v950, 0.0
    %967 = vadd.xlane.f32.xlu0 %v966
    %v968 = vpop.xlane.xlu0 %967
    %v969 = vsel %vm162, %v952, 0.0
    %970 = vadd.xlane.f32.xlu0 %v969
    %v971 = vpop.xlane.xlu0 %970
    %v972 = vsel %vm162, %v954, 0.0
    %973 = vadd.xlane.f32.xlu0 %v972
    %v974 = vpop.xlane.xlu0 %973
    %v975 = vsel %vm162, %v956, 0.0
    %976 = vadd.xlane.f32.xlu0 %v975
    %v977 = vpop.xlane.xlu0 %976
    %v978 = vsel %vm162, %v958, 0.0
    %979 = vadd.xlane.f32.xlu0 %v978
    %v980 = vpop.xlane.xlu0 %979
    %v981 = vsel %vm162, %v960, 0.0
    %982 = vadd.xlane.f32.xlu0 %v981
    %v983 = vpop.xlane.xlu0 %982
    %v984 = vsel %vm162, %v962, 0.0
    %985 = vadd.xlane.f32.xlu0 %v984
    %v986 = vpop.xlane.xlu0 %985
    %v987 = vrcp.pop %v965
    %v988 = vrcp.pop %v968
    %v989 = vrcp.pop %v971
    %v990 = vrcp.pop %v974
    %v991 = vrcp.pop %v977
    %v992 = vrcp.pop %v980
    %v993 = vrcp.pop %v983
    %v994 = vrcp.pop %v986
    %v995 = vmul.f32 %v948, %v987
    %v996 = vmul.f32 %v950, %v988
    %v997 = vmul.f32 %v952, %v989
    %v998 = vmul.f32 %v954, %v990
    %v999 = vmul.f32 %v956, %v991
    %v1000 = vmul.f32 %v958, %v992
    %v1001 = vmul.f32 %v960, %v993
    %v1002 = vmul.f32 %v962, %v994
    %1003 = vrot.lane.b32.xlu0 %v149, 64
    %v1004 = vpop.permute.xlu0 %1003
    %v1007 = vsel %vm162, %v995, 0
    %1009 = vmatprep.subr.mxu0 0.0
    %1010 = vmatpush1.msra.mxu0 %v1004
    %1011 = vmatprep.subr.mxu0 0.0
    %1012 = vmatpush1.msra.mxu0 0.0
    %1013 = vmatprep.subr.mxu0 0.0
    %1014 = vmatpush1.msra.mxu0 0.0
    %1015 = vmatprep.subr.mxu0 0.0
    %1016 = vmatpush1.msra.mxu0 0.0
    %1017 = vmatprep.subr.mxu0 0.0
    %1018 = vmatpush1.msra.mxu0 0.0
    %1019 = vmatprep.subr.mxu0 0.0
    %1020 = vmatpush1.msra.mxu0 0.0
    %1021 = vmatprep.subr.mxu0 0.0
    %1022 = vmatpush1.msra.mxu0 0.0
    %1023 = vmatprep.subr.mxu0 0.0
    %1024 = vmatpush1.msra.mxu0 0.0
    %1025 = vmatprep.subr.mxu0 0.0
    %1026 = vmatpush1.msra.mxu0 0.0
    %1027 = vmatprep.subr.mxu0 0.0
    %1028 = vmatpush1.msra.mxu0 0.0
    %1029 = vmatprep.subr.mxu0 0.0
    %1030 = vmatpush1.msra.mxu0 0.0
    %1031 = vmatprep.subr.mxu0 0.0
    %1032 = vmatpush1.msra.mxu0 0.0
    %1033 = vmatprep.subr.mxu0 0.0
    %1034 = vmatpush1.msra.mxu0 0.0
    %1035 = vmatprep.subr.mxu0 0.0
    %1036 = vmatpush1.msra.mxu0 0.0
    %1037 = vmatprep.subr.mxu0 0.0
    %1038 = vmatpush1.msra.mxu0 0.0
    %1039 = vmatprep.subr.mxu0 0.0
    %1040 = vmatpush1.msra.mxu0 0.0
    %1041 = vmatprep.subr.mxu0 0.0
    %1042 = vmatpush1.msra.mxu0 0.0
    %1043 = vmatprep.subr.mxu0 0.0
    %1044 = vmatpush1.msra.mxu0 0.0
    %1045 = vmatprep.subr.mxu0 0.0
    %1046 = vmatpush1.msra.mxu0 0.0
    %1047 = vmatprep.subr.mxu0 0.0
    %1048 = vmatpush1.msra.mxu0 0.0
    %1049 = vmatprep.subr.mxu0 0.0
    %1050 = vmatpush1.msra.mxu0 0.0
    %1051 = vmatprep.subr.mxu0 0.0
    %1052 = vmatpush1.msra.mxu0 0.0
    %1053 = vmatprep.subr.mxu0 0.0
    %1054 = vmatpush1.msra.mxu0 0.0
    %1055 = vmatprep.subr.mxu0 0.0
    %1056 = vmatpush1.msra.mxu0 0.0
    %1057 = vmatprep.subr.mxu0 0.0
    %1058 = vmatpush1.msra.mxu0 0.0
    %1059 = vmatprep.subr.mxu0 0.0
    %1060 = vmatpush1.msra.mxu0 0.0
    %1061 = vmatprep.subr.mxu0 0.0
    %1062 = vmatpush1.msra.mxu0 0.0
    %1063 = vmatprep.subr.mxu0 0.0
    %1064 = vmatpush1.msra.mxu0 0.0
    %1065 = vmatprep.subr.mxu0 0.0
    %1066 = vmatpush1.msra.mxu0 0.0
    %1067 = vmatprep.subr.mxu0 0.0
    %1068 = vmatpush1.msra.mxu0 0.0
    %1069 = vmatprep.subr.mxu0 0.0
    %1070 = vmatpush1.msra.mxu0 0.0
    %1071 = vmatprep.subr.mxu0 0.0
    %1072 = vmatpush1.msra.mxu0 0.0
    %1073 = vmatprep.mubr.f32.mxu0 0.0
    %1074 = vmatmul.mubr.f32.gmra.mrb[0].mxu0 %v1007
    %v1075 = vpop.f32.mrb[0].mxu0
    %v1076 = vadd.f32 0.0, %v1075
    %v1077 = vpop.f32.mrb[0].mxu0
    %1078 = vdwg.mxu0
    %v1079 = vld [vmem:[#allocation7] sm:$0xff]
    %1080 = vrot.lane.b32.xlu0 %v149, 56
    %v1081 = vpop.permute.xlu0 %1080
    %v1084 = vsel %vm162, %v996, 0
    %1086 = vmatprep.subr.mxu0 0.0
    %1087 = vmatpush1.msra.mxu0 %v1081
    %1088 = vmatprep.subr.mxu0 0.0
    %1089 = vmatpush1.msra.mxu0 0.0
    %1090 = vmatprep.subr.mxu0 0.0
    %1091 = vmatpush1.msra.mxu0 0.0
    %1092 = vmatprep.subr.mxu0 0.0
    %1093 = vmatpush1.msra.mxu0 0.0
    %1094 = vmatprep.subr.mxu0 0.0
    %1095 = vmatpush1.msra.mxu0 0.0
    %1096 = vmatprep.subr.mxu0 0.0
    %1097 = vmatpush1.msra.mxu0 0.0
    %1098 = vmatprep.subr.mxu0 0.0
    %1099 = vmatpush1.msra.mxu0 0.0
    %1100 = vmatprep.subr.mxu0 0.0
    %1101 = vmatpush1.msra.mxu0 0.0
    %1102 = vmatprep.subr.mxu0 0.0
    %1103 = vmatpush1.msra.mxu0 0.0
    %1104 = vmatprep.subr.mxu0 0.0
    %1105 = vmatpush1.msra.mxu0 0.0
    %1106 = vmatprep.subr.mxu0 0.0
    %1107 = vmatpush1.msra.mxu0 0.0
    %1108 = vmatprep.subr.mxu0 0.0
    %1109 = vmatpush1.msra.mxu0 0.0
    %1110 = vmatprep.subr.mxu0 0.0
    %1111 = vmatpush1.msra.mxu0 0.0
    %1112 = vmatprep.subr.mxu0 0.0
    %1113 = vmatpush1.msra.mxu0 0.0
    %1114 = vmatprep.subr.mxu0 0.0
    %1115 = vmatpush1.msra.mxu0 0.0
    %1116 = vmatprep.subr.mxu0 0.0
    %1117 = vmatpush1.msra.mxu0 0.0
    %1118 = vmatprep.subr.mxu0 0.0
    %1119 = vmatpush1.msra.mxu0 0.0
    %1120 = vmatprep.subr.mxu0 0.0
    %1121 = vmatpush1.msra.mxu0 0.0
    %1122 = vmatprep.subr.mxu0 0.0
    %1123 = vmatpush1.msra.mxu0 0.0
    %1124 = vmatprep.subr.mxu0 0.0
    %1125 = vmatpush1.msra.mxu0 0.0
    %1126 = vmatprep.subr.mxu0 0.0
    %1127 = vmatpush1.msra.mxu0 0.0
    %1128 = vmatprep.subr.mxu0 0.0
    %1129 = vmatpush1.msra.mxu0 0.0
    %1130 = vmatprep.subr.mxu0 0.0
    %1131 = vmatpush1.msra.mxu0 0.0
    %1132 = vmatprep.subr.mxu0 0.0
    %1133 = vmatpush1.msra.mxu0 0.0
    %1134 = vmatprep.subr.mxu0 0.0
    %1135 = vmatpush1.msra.mxu0 0.0
    %1136 = vmatprep.subr.mxu0 0.0
    %1137 = vmatpush1.msra.mxu0 0.0
    %1138 = vmatprep.subr.mxu0 0.0
    %1139 = vmatpush1.msra.mxu0 0.0
    %1140 = vmatprep.subr.mxu0 0.0
    %1141 = vmatpush1.msra.mxu0 0.0
    %1142 = vmatprep.subr.mxu0 0.0
    %1143 = vmatpush1.msra.mxu0 0.0
    %1144 = vmatprep.subr.mxu0 0.0
    %1145 = vmatpush1.msra.mxu0 0.0
    %1146 = vmatprep.subr.mxu0 0.0
    %1147 = vmatpush1.msra.mxu0 0.0
    %1148 = vmatprep.subr.mxu0 0.0
    %1149 = vmatpush1.msra.mxu0 0.0
    %1150 = vmatprep.mubr.f32.mxu0 0.0
    %1151 = vmatmul.mubr.f32.gmra.mrb[0].mxu0 %v1084
    %v1152 = vpop.f32.mrb[0].mxu0
    %v1153 = vadd.f32 0.0, %v1152
    %v1154 = vpop.f32.mrb[0].mxu0
    %1155 = vdwg.mxu0
    %v1156 = vld [vmem:[#allocation7 + $0x8] sm:$0xff]
    %v1158 = vsel %vm162, %v1153, 0
    %1160 = vmatprep.subr.mxu0 0.0
    %1161 = vmatpush1.msra.mxu0 %v1156
    %1162 = vmatprep.subr.mxu0 0.0
    %1163 = vmatpush1.msra.mxu0 0.0
    %1164 = vmatprep.subr.mxu0 0.0
    %1165 = vmatpush1.msra.mxu0 0.0
    %1166 = vmatprep.subr.mxu0 0.0
    %1167 = vmatpush1.msra.mxu0 0.0
    %1168 = vmatprep.subr.mxu0 0.0
    %1169 = vmatpush1.msra.mxu0 0.0
    %1170 = vmatprep.subr.mxu0 0.0
    %1171 = vmatpush1.msra.mxu0 0.0
    %1172 = vmatprep.subr.mxu0 0.0
    %1173 = vmatpush1.msra.mxu0 0.0
    %1174 = vmatprep.subr.mxu0 0.0
    %1175 = vmatpush1.msra.mxu0 0.0
    %1176 = vmatprep.subr.mxu0 0.0
    %1177 = vmatpush1.msra.mxu0 0.0
    %1178 = vmatprep.subr.mxu0 0.0
    %1179 = vmatpush1.msra.mxu0 0.0
    %1180 = vmatprep.subr.mxu0 0.0
    %1181 = vmatpush1.msra.mxu0 0.0
    %1182 = vmatprep.subr.mxu0 0.0
    %1183 = vmatpush1.msra.mxu0 0.0
    %1184 = vmatprep.subr.mxu0 0.0
    %1185 = vmatpush1.msra.mxu0 0.0
    %1186 = vmatprep.subr.mxu0 0.0
    %1187 = vmatpush1.msra.mxu0 0.0
    %1188 = vmatprep.subr.mxu0 0.0
    %1189 = vmatpush1.msra.mxu0 0.0
    %1190 = vmatprep.subr.mxu0 0.0
    %1191 = vmatpush1.msra.mxu0 0.0
    %1192 = vmatprep.subr.mxu0 0.0
    %1193 = vmatpush1.msra.mxu0 0.0
    %1194 = vmatprep.subr.mxu0 0.0
    %1195 = vmatpush1.msra.mxu0 0.0
    %1196 = vmatprep.subr.mxu0 0.0
    %1197 = vmatpush1.msra.mxu0 0.0
    %1198 = vmatprep.subr.mxu0 0.0
    %1199 = vmatpush1.msra.mxu0 0.0
    %1200 = vmatprep.subr.mxu0 0.0
    %1201 = vmatpush1.msra.mxu0 0.0
    %1202 = vmatprep.subr.mxu0 0.0
    %1203 = vmatpush1.msra.mxu0 0.0
    %1204 = vmatprep.subr.mxu0 0.0
    %1205 = vmatpush1.msra.mxu0 0.0
    %1206 = vmatprep.subr.mxu0 0.0
    %1207 = vmatpush1.msra.mxu0 0.0
    %1208 = vmatprep.subr.mxu0 0.0
    %1209 = vmatpush1.msra.mxu0 0.0
    %1210 = vmatprep.subr.mxu0 0.0
    %1211 = vmatpush1.msra.mxu0 0.0
    %1212 = vmatprep.subr.mxu0 0.0
    %1213 = vmatpush1.msra.mxu0 0.0
    %1214 = vmatprep.subr.mxu0 0.0
    %1215 = vmatpush1.msra.mxu0 0.0
    %1216 = vmatprep.subr.mxu0 0.0
    %1217 = vmatpush1.msra.mxu0 0.0
    %1218 = vmatprep.subr.mxu0 0.0
    %1219 = vmatpush1.msra.mxu0 0.0
    %1220 = vmatprep.subr.mxu0 0.0
    %1221 = vmatpush1.msra.mxu0 0.0
    %1222 = vmatprep.subr.mxu0 0.0
    %1223 = vmatpush1.msra.mxu0 0.0
    %1224 = vmatprep.mubr.f32.mxu0 0.0
    %1225 = vmatmul.mubr.f32.gmra.mrb[0].mxu0 %v1158
    %v1226 = vpop.f32.mrb[0].mxu0
    %v1227 = vadd.f32 0.0, %v1226
    %v1228 = vpop.f32.mrb[0].mxu0
    %1229 = vdwg.mxu0
    %1230 = vrot.lane.b32.xlu0 %v149, 48
    %v1231 = vpop.permute.xlu0 %1230
    %v1234 = vsel %vm162, %v997, 0
    %1236 = vmatprep.subr.mxu0 0.0
    %1237 = vmatpush1.msra.mxu0 %v1231
    %1238 = vmatprep.subr.mxu0 0.0
    %1239 = vmatpush1.msra.mxu0 0.0
    %1240 = vmatprep.subr.mxu0 0.0
    %1241 = vmatpush1.msra.mxu0 0.0
    %1242 = vmatprep.subr.mxu0 0.0
    %1243 = vmatpush1.msra.mxu0 0.0
    %1244 = vmatprep.subr.mxu0 0.0
    %1245 = vmatpush1.msra.mxu0 0.0
    %1246 = vmatprep.subr.mxu0 0.0
    %1247 = vmatpush1.msra.mxu0 0.0
    %1248 = vmatprep.subr.mxu0 0.0
    %1249 = vmatpush1.msra.mxu0 0.0
    %1250 = vmatprep.subr.mxu0 0.0
    %1251 = vmatpush1.msra.mxu0 0.0
    %1252 = vmatprep.subr.mxu0 0.0
    %1253 = vmatpush1.msra.mxu0 0.0
    %1254 = vmatprep.subr.mxu0 0.0
    %1255 = vmatpush1.msra.mxu0 0.0
    %1256 = vmatprep.subr.mxu0 0.0
    %1257 = vmatpush1.msra.mxu0 0.0
    %1258 = vmatprep.subr.mxu0 0.0
    %1259 = vmatpush1.msra.mxu0 0.0
    %1260 = vmatprep.subr.mxu0 0.0
    %1261 = vmatpush1.msra.mxu0 0.0
    %1262 = vmatprep.subr.mxu0 0.0
    %1263 = vmatpush1.msra.mxu0 0.0
    %1264 = vmatprep.subr.mxu0 0.0
    %1265 = vmatpush1.msra.mxu0 0.0
    %1266 = vmatprep.subr.mxu0 0.0
    %1267 = vmatpush1.msra.mxu0 0.0
    %1268 = vmatprep.subr.mxu0 0.0
    %1269 = vmatpush1.msra.mxu0 0.0
    %1270 = vmatprep.subr.mxu0 0.0
    %1271 = vmatpush1.msra.mxu0 0.0
    %1272 = vmatprep.subr.mxu0 0.0
    %1273 = vmatpush1.msra.mxu0 0.0
    %1274 = vmatprep.subr.mxu0 0.0
    %1275 = vmatpush1.msra.mxu0 0.0
    %1276 = vmatprep.subr.mxu0 0.0
    %1277 = vmatpush1.msra.mxu0 0.0
    %1278 = vmatprep.subr.mxu0 0.0
    %1279 = vmatpush1.msra.mxu0 0.0
    %1280 = vmatprep.subr.mxu0 0.0
    %1281 = vmatpush1.msra.mxu0 0.0
    %1282 = vmatprep.subr.mxu0 0.0
    %1283 = vmatpush1.msra.mxu0 0.0
    %1284 = vmatprep.subr.mxu0 0.0
    %1285 = vmatpush1.msra.mxu0 0.0
    %1286 = vmatprep.subr.mxu0 0.0
    %1287 = vmatpush1.msra.mxu0 0.0
    %1288 = vmatprep.subr.mxu0 0.0
    %1289 = vmatpush1.msra.mxu0 0.0
    %1290 = vmatprep.subr.mxu0 0.0
    %1291 = vmatpush1.msra.mxu0 0.0
    %1292 = vmatprep.subr.mxu0 0.0
    %1293 = vmatpush1.msra.mxu0 0.0
    %1294 = vmatprep.subr.mxu0 0.0
    %1295 = vmatpush1.msra.mxu0 0.0
    %1296 = vmatprep.subr.mxu0 0.0
    %1297 = vmatpush1.msra.mxu0 0.0
    %1298 = vmatprep.subr.mxu0 0.0
    %1299 = vmatpush1.msra.mxu0 0.0
    %1300 = vmatprep.mubr.f32.mxu0 0.0
    %1301 = vmatmul.mubr.f32.gmra.mrb[0].mxu0 %v1234
    %v1302 = vpop.f32.mrb[0].mxu0
    %v1303 = vadd.f32 0.0, %v1302
    %v1304 = vpop.f32.mrb[0].mxu0
    %1305 = vdwg.mxu0
    %v1306 = vld [vmem:[#allocation7 + $0x10] sm:$0xff]
    %1307 = vrot.lane.b32.xlu0 %v149, 40
    %v1308 = vpop.permute.xlu0 %1307
    %v1311 = vsel %vm162, %v998, 0
    %1313 = vmatprep.subr.mxu0 0.0
    %1314 = vmatpush1.msra.mxu0 %v1308
    %1315 = vmatprep.subr.mxu0 0.0
    %1316 = vmatpush1.msra.mxu0 0.0
    %1317 = vmatprep.subr.mxu0 0.0
    %1318 = vmatpush1.msra.mxu0 0.0
    %1319 = vmatprep.subr.mxu0 0.0
    %1320 = vmatpush1.msra.mxu0 0.0
    %1321 = vmatprep.subr.mxu0 0.0
    %1322 = vmatpush1.msra.mxu0 0.0
    %1323 = vmatprep.subr.mxu0 0.0
    %1324 = vmatpush1.msra.mxu0 0.0
    %1325 = vmatprep.subr.mxu0 0.0
    %1326 = vmatpush1.msra.mxu0 0.0
    %1327 = vmatprep.subr.mxu0 0.0
    %1328 = vmatpush1.msra.mxu0 0.0
    %1329 = vmatprep.subr.mxu0 0.0
    %1330 = vmatpush1.msra.mxu0 0.0
    %1331 = vmatprep.subr.mxu0 0.0
    %1332 = vmatpush1.msra.mxu0 0.0
    %1333 = vmatprep.subr.mxu0 0.0
    %1334 = vmatpush1.msra.mxu0 0.0
    %1335 = vmatprep.subr.mxu0 0.0
    %1336 = vmatpush1.msra.mxu0 0.0
    %1337 = vmatprep.subr.mxu0 0.0
    %1338 = vmatpush1.msra.mxu0 0.0
    %1339 = vmatprep.subr.mxu0 0.0
    %1340 = vmatpush1.msra.mxu0 0.0
    %1341 = vmatprep.subr.mxu0 0.0
    %1342 = vmatpush1.msra.mxu0 0.0
    %1343 = vmatprep.subr.mxu0 0.0
    %1344 = vmatpush1.msra.mxu0 0.0
    %1345 = vmatprep.subr.mxu0 0.0
    %1346 = vmatpush1.msra.mxu0 0.0
    %1347 = vmatprep.subr.mxu0 0.0
    %1348 = vmatpush1.msra.mxu0 0.0
    %1349 = vmatprep.subr.mxu0 0.0
    %1350 = vmatpush1.msra.mxu0 0.0
    %1351 = vmatprep.subr.mxu0 0.0
    %1352 = vmatpush1.msra.mxu0 0.0
    %1353 = vmatprep.subr.mxu0 0.0
    %1354 = vmatpush1.msra.mxu0 0.0
    %1355 = vmatprep.subr.mxu0 0.0
    %1356 = vmatpush1.msra.mxu0 0.0
    %1357 = vmatprep.subr.mxu0 0.0
    %1358 = vmatpush1.msra.mxu0 0.0
    %1359 = vmatprep.subr.mxu0 0.0
    %1360 = vmatpush1.msra.mxu0 0.0
    %1361 = vmatprep.subr.mxu0 0.0
    %1362 = vmatpush1.msra.mxu0 0.0
    %1363 = vmatprep.subr.mxu0 0.0
    %1364 = vmatpush1.msra.mxu0 0.0
    %1365 = vmatprep.subr.mxu0 0.0
    %1366 = vmatpush1.msra.mxu0 0.0
    %1367 = vmatprep.subr.mxu0 0.0
    %1368 = vmatpush1.msra.mxu0 0.0
    %1369 = vmatprep.subr.mxu0 0.0
    %1370 = vmatpush1.msra.mxu0 0.0
    %1371 = vmatprep.subr.mxu0 0.0
    %1372 = vmatpush1.msra.mxu0 0.0
    %1373 = vmatprep.subr.mxu0 0.0
    %1374 = vmatpush1.msra.mxu0 0.0
    %1375 = vmatprep.subr.mxu0 0.0
    %1376 = vmatpush1.msra.mxu0 0.0
    %1377 = vmatprep.mubr.f32.mxu0 0.0
    %1378 = vmatmul.mubr.f32.gmra.mrb[0].mxu0 %v1311
    %v1379 = vpop.f32.mrb[0].mxu0
    %v1380 = vadd.f32 0.0, %v1379
    %v1381 = vpop.f32.mrb[0].mxu0
    %1382 = vdwg.mxu0
    %v1383 = vld [vmem:[#allocation7 + $0x18] sm:$0xff]
    %v1385 = vsel %vm162, %v1380, 0
    %1387 = vmatprep.subr.mxu0 0.0
    %1388 = vmatpush1.msra.mxu0 %v1383
    %1389 = vmatprep.subr.mxu0 0.0
    %1390 = vmatpush1.msra.mxu0 0.0
    %1391 = vmatprep.subr.mxu0 0.0
    %1392 = vmatpush1.msra.mxu0 0.0
    %1393 = vmatprep.subr.mxu0 0.0
    %1394 = vmatpush1.msra.mxu0 0.0
    %1395 = vmatprep.subr.mxu0 0.0
    %1396 = vmatpush1.msra.mxu0 0.0
    %1397 = vmatprep.subr.mxu0 0.0
    %1398 = vmatpush1.msra.mxu0 0.0
    %1399 = vmatprep.subr.mxu0 0.0
    %1400 = vmatpush1.msra.mxu0 0.0
    %1401 = vmatprep.subr.mxu0 0.0
    %1402 = vmatpush1.msra.mxu0 0.0
    %1403 = vmatprep.subr.mxu0 0.0
    %1404 = vmatpush1.msra.mxu0 0.0
    %1405 = vmatprep.subr.mxu0 0.0
    %1406 = vmatpush1.msra.mxu0 0.0
    %1407 = vmatprep.subr.mxu0 0.0
    %1408 = vmatpush1.msra.mxu0 0.0
    %1409 = vmatprep.subr.mxu0 0.0
    %1410 = vmatpush1.msra.mxu0 0.0
    %1411 = vmatprep.subr.mxu0 0.0
    %1412 = vmatpush1.msra.mxu0 0.0
    %1413 = vmatprep.subr.mxu0 0.0
    %1414 = vmatpush1.msra.mxu0 0.0
    %1415 = vmatprep.subr.mxu0 0.0
    %1416 = vmatpush1.msra.mxu0 0.0
    %1417 = vmatprep.subr.mxu0 0.0
    %1418 = vmatpush1.msra.mxu0 0.0
    %1419 = vmatprep.subr.mxu0 0.0
    %1420 = vmatpush1.msra.mxu0 0.0
    %1421 = vmatprep.subr.mxu0 0.0
    %1422 = vmatpush1.msra.mxu0 0.0
    %1423 = vmatprep.subr.mxu0 0.0
    %1424 = vmatpush1.msra.mxu0 0.0
    %1425 = vmatprep.subr.mxu0 0.0
    %1426 = vmatpush1.msra.mxu0 0.0
    %1427 = vmatprep.subr.mxu0 0.0
    %1428 = vmatpush1.msra.mxu0 0.0
    %1429 = vmatprep.subr.mxu0 0.0
    %1430 = vmatpush1.msra.mxu0 0.0
    %1431 = vmatprep.subr.mxu0 0.0
    %1432 = vmatpush1.msra.mxu0 0.0
    %1433 = vmatprep.subr.mxu0 0.0
    %1434 = vmatpush1.msra.mxu0 0.0
    %1435 = vmatprep.subr.mxu0 0.0
    %1436 = vmatpush1.msra.mxu0 0.0
    %1437 = vmatprep.subr.mxu0 0.0
    %1438 = vmatpush1.msra.mxu0 0.0
    %1439 = vmatprep.subr.mxu0 0.0
    %1440 = vmatpush1.msra.mxu0 0.0
    %1441 = vmatprep.subr.mxu0 0.0
    %1442 = vmatpush1.msra.mxu0 0.0
    %1443 = vmatprep.subr.mxu0 0.0
    %1444 = vmatpush1.msra.mxu0 0.0
    %1445 = vmatprep.subr.mxu0 0.0
    %1446 = vmatpush1.msra.mxu0 0.0
    %1447 = vmatprep.subr.mxu0 0.0
    %1448 = vmatpush1.msra.mxu0 0.0
    %1449 = vmatprep.subr.mxu0 0.0
    %1450 = vmatpush1.msra.mxu0 0.0
    %1451 = vmatprep.mubr.f32.mxu0 0.0
    %1452 = vmatmul.mubr.f32.gmra.mrb[0].mxu0 %v1385
    %v1453 = vpop.f32.mrb[0].mxu0
    %v1454 = vadd.f32 0.0, %v1453
    %v1455 = vpop.f32.mrb[0].mxu0
    %1456 = vdwg.mxu0
    %v1458 = vsel %vm162, %v1076, 0
    %1460 = vmatprep.subr.mxu0 0.0
    %1461 = vmatpush1.msra.mxu0 %v1079
    %1462 = vmatprep.subr.mxu0 0.0
    %1463 = vmatpush1.msra.mxu0 0.0
    %1464 = vmatprep.subr.mxu0 0.0
    %1465 = vmatpush1.msra.mxu0 0.0
    %1466 = vmatprep.subr.mxu0 0.0
    %1467 = vmatpush1.msra.mxu0 0.0
    %1468 = vmatprep.subr.mxu0 0.0
    %1469 = vmatpush1.msra.mxu0 0.0
    %1470 = vmatprep.subr.mxu0 0.0
    %1471 = vmatpush1.msra.mxu0 0.0
    %1472 = vmatprep.subr.mxu0 0.0
    %1473 = vmatpush1.msra.mxu0 0.0
    %1474 = vmatprep.subr.mxu0 0.0
    %1475 = vmatpush1.msra.mxu0 0.0
    %1476 = vmatprep.subr.mxu0 0.0
    %1477 = vmatpush1.msra.mxu0 0.0
    %1478 = vmatprep.subr.mxu0 0.0
    %1479 = vmatpush1.msra.mxu0 0.0
    %1480 = vmatprep.subr.mxu0 0.0
    %1481 = vmatpush1.msra.mxu0 0.0
    %1482 = vmatprep.subr.mxu0 0.0
    %1483 = vmatpush1.msra.mxu0 0.0
    %1484 = vmatprep.subr.mxu0 0.0
    %1485 = vmatpush1.msra.mxu0 0.0
    %1486 = vmatprep.subr.mxu0 0.0
    %1487 = vmatpush1.msra.mxu0 0.0
    %1488 = vmatprep.subr.mxu0 0.0
    %1489 = vmatpush1.msra.mxu0 0.0
    %1490 = vmatprep.subr.mxu0 0.0
    %1491 = vmatpush1.msra.mxu0 0.0
    %1492 = vmatprep.subr.mxu0 0.0
    %1493 = vmatpush1.msra.mxu0 0.0
    %1494 = vmatprep.subr.mxu0 0.0
    %1495 = vmatpush1.msra.mxu0 0.0
    %1496 = vmatprep.subr.mxu0 0.0
    %1497 = vmatpush1.msra.mxu0 0.0
    %1498 = vmatprep.subr.mxu0 0.0
    %1499 = vmatpush1.msra.mxu0 0.0
    %1500 = vmatprep.subr.mxu0 0.0
    %1501 = vmatpush1.msra.mxu0 0.0
    %1502 = vmatprep.subr.mxu0 0.0
    %1503 = vmatpush1.msra.mxu0 0.0
    %1504 = vmatprep.subr.mxu0 0.0
    %1505 = vmatpush1.msra.mxu0 0.0
    %1506 = vmatprep.subr.mxu0 0.0
    %1507 = vmatpush1.msra.mxu0 0.0
    %1508 = vmatprep.subr.mxu0 0.0
    %1509 = vmatpush1.msra.mxu0 0.0
    %1510 = vmatprep.subr.mxu0 0.0
    %1511 = vmatpush1.msra.mxu0 0.0
    %1512 = vmatprep.subr.mxu0 0.0
    %1513 = vmatpush1.msra.mxu0 0.0
    %1514 = vmatprep.subr.mxu0 0.0
    %1515 = vmatpush1.msra.mxu0 0.0
    %1516 = vmatprep.subr.mxu0 0.0
    %1517 = vmatpush1.msra.mxu0 0.0
    %1518 = vmatprep.subr.mxu0 0.0
    %1519 = vmatpush1.msra.mxu0 0.0
    %1520 = vmatprep.subr.mxu0 0.0
    %1521 = vmatpush1.msra.mxu0 0.0
    %1522 = vmatprep.subr.mxu0 0.0
    %1523 = vmatpush1.msra.mxu0 0.0
    %1524 = vmatprep.mubr.f32.mxu0 0.0
    %1525 = vmatmul.mubr.f32.gmra.mrb[0].mxu0 %v1458
    %v1526 = vpop.f32.mrb[0].mxu0
    %v1527 = vadd.f32 %v1227, %v1526
    %v1528 = vpop.f32.mrb[0].mxu0
    %1529 = vdwg.mxu0
    %v1531 = vsel %vm162, %v1303, 0
    %1533 = vmatprep.subr.mxu0 0.0
    %1534 = vmatpush1.msra.mxu0 %v1306
    %1535 = vmatprep.subr.mxu0 0.0
    %1536 = vmatpush1.msra.mxu0 0.0
    %1537 = vmatprep.subr.mxu0 0.0
    %1538 = vmatpush1.msra.mxu0 0.0
    %1539 = vmatprep.subr.mxu0 0.0
    %1540 = vmatpush1.msra.mxu0 0.0
    %1541 = vmatprep.subr.mxu0 0.0
    %1542 = vmatpush1.msra.mxu0 0.0
    %1543 = vmatprep.subr.mxu0 0.0
    %1544 = vmatpush1.msra.mxu0 0.0
    %1545 = vmatprep.subr.mxu0 0.0
    %1546 = vmatpush1.msra.mxu0 0.0
    %1547 = vmatprep.subr.mxu0 0.0
    %1548 = vmatpush1.msra.mxu0 0.0
    %1549 = vmatprep.subr.mxu0 0.0
    %1550 = vmatpush1.msra.mxu0 0.0
    %1551 = vmatprep.subr.mxu0 0.0
    %1552 = vmatpush1.msra.mxu0 0.0
    %1553 = vmatprep.subr.mxu0 0.0
    %1554 = vmatpush1.msra.mxu0 0.0
    %1555 = vmatprep.subr.mxu0 0.0
    %1556 = vmatpush1.msra.mxu0 0.0
    %1557 = vmatprep.subr.mxu0 0.0
    %1558 = vmatpush1.msra.mxu0 0.0
    %1559 = vmatprep.subr.mxu0 0.0
    %1560 = vmatpush1.msra.mxu0 0.0
    %1561 = vmatprep.subr.mxu0 0.0
    %1562 = vmatpush1.msra.mxu0 0.0
    %1563 = vmatprep.subr.mxu0 0.0
    %1564 = vmatpush1.msra.mxu0 0.0
    %1565 = vmatprep.subr.mxu0 0.0
    %1566 = vmatpush1.msra.mxu0 0.0
    %1567 = vmatprep.subr.mxu0 0.0
    %1568 = vmatpush1.msra.mxu0 0.0
    %1569 = vmatprep.subr.mxu0 0.0
    %1570 = vmatpush1.msra.mxu0 0.0
    %1571 = vmatprep.subr.mxu0 0.0
    %1572 = vmatpush1.msra.mxu0 0.0
    %1573 = vmatprep.subr.mxu0 0.0
    %1574 = vmatpush1.msra.mxu0 0.0
    %1575 = vmatprep.subr.mxu0 0.0
    %1576 = vmatpush1.msra.mxu0 0.0
    %1577 = vmatprep.subr.mxu0 0.0
    %1578 = vmatpush1.msra.mxu0 0.0
    %1579 = vmatprep.subr.mxu0 0.0
    %1580 = vmatpush1.msra.mxu0 0.0
    %1581 = vmatprep.subr.mxu0 0.0
    %1582 = vmatpush1.msra.mxu0 0.0
    %1583 = vmatprep.subr.mxu0 0.0
    %1584 = vmatpush1.msra.mxu0 0.0
    %1585 = vmatprep.subr.mxu0 0.0
    %1586 = vmatpush1.msra.mxu0 0.0
    %1587 = vmatprep.subr.mxu0 0.0
    %1588 = vmatpush1.msra.mxu0 0.0
    %1589 = vmatprep.subr.mxu0 0.0
    %1590 = vmatpush1.msra.mxu0 0.0
    %1591 = vmatprep.subr.mxu0 0.0
    %1592 = vmatpush1.msra.mxu0 0.0
    %1593 = vmatprep.subr.mxu0 0.0
    %1594 = vmatpush1.msra.mxu0 0.0
    %1595 = vmatprep.subr.mxu0 0.0
    %1596 = vmatpush1.msra.mxu0 0.0
    %1597 = vmatprep.mubr.f32.mxu0 0.0
    %1598 = vmatmul.mubr.f32.gmra.mrb[0].mxu0 %v1531
    %v1599 = vpop.f32.mrb[0].mxu0
    %v1600 = vadd.f32 %v1454, %v1599
    %v1601 = vpop.f32.mrb[0].mxu0
    %1602 = vdwg.mxu0
    %v1603 = vadd.f32 %v1527, %v1600
    %1604 = vrot.lane.b32.xlu0 %v154, 64
    %v1605 = vpop.permute.xlu0 %1604
    %v1608 = vsel %vm162, %v999, 0
    %1610 = vmatprep.subr.mxu0 0.0
    %1611 = vmatpush1.msra.mxu0 %v1605
    %1612 = vmatprep.subr.mxu0 0.0
    %1613 = vmatpush1.msra.mxu0 0.0
    %1614 = vmatprep.subr.mxu0 0.0
    %1615 = vmatpush1.msra.mxu0 0.0
    %1616 = vmatprep.subr.mxu0 0.0
    %1617 = vmatpush1.msra.mxu0 0.0
    %1618 = vmatprep.subr.mxu0 0.0
    %1619 = vmatpush1.msra.mxu0 0.0
    %1620 = vmatprep.subr.mxu0 0.0
    %1621 = vmatpush1.msra.mxu0 0.0
    %1622 = vmatprep.subr.mxu0 0.0
    %1623 = vmatpush1.msra.mxu0 0.0
    %1624 = vmatprep.subr.mxu0 0.0
    %1625 = vmatpush1.msra.mxu0 0.0
    %1626 = vmatprep.subr.mxu0 0.0
    %1627 = vmatpush1.msra.mxu0 0.0
    %1628 = vmatprep.subr.mxu0 0.0
    %1629 = vmatpush1.msra.mxu0 0.0
    %1630 = vmatprep.subr.mxu0 0.0
    %1631 = vmatpush1.msra.mxu0 0.0
    %1632 = vmatprep.subr.mxu0 0.0
    %1633 = vmatpush1.msra.mxu0 0.0
    %1634 = vmatprep.subr.mxu0 0.0
    %1635 = vmatpush1.msra.mxu0 0.0
    %1636 = vmatprep.subr.mxu0 0.0
    %1637 = vmatpush1.msra.mxu0 0.0
    %1638 = vmatprep.subr.mxu0 0.0
    %1639 = vmatpush1.msra.mxu0 0.0
    %1640 = vmatprep.subr.mxu0 0.0
    %1641 = vmatpush1.msra.mxu0 0.0
    %1642 = vmatprep.subr.mxu0 0.0
    %1643 = vmatpush1.msra.mxu0 0.0
    %1644 = vmatprep.subr.mxu0 0.0
    %1645 = vmatpush1.msra.mxu0 0.0
    %1646 = vmatprep.subr.mxu0 0.0
    %1647 = vmatpush1.msra.mxu0 0.0
    %1648 = vmatprep.subr.mxu0 0.0
    %1649 = vmatpush1.msra.mxu0 0.0
    %1650 = vmatprep.subr.mxu0 0.0
    %1651 = vmatpush1.msra.mxu0 0.0
    %1652 = vmatprep.subr.mxu0 0.0
    %1653 = vmatpush1.msra.mxu0 0.0
    %1654 = vmatprep.subr.mxu0 0.0
    %1655 = vmatpush1.msra.mxu0 0.0
    %1656 = vmatprep.subr.mxu0 0.0
    %1657 = vmatpush1.msra.mxu0 0.0
    %1658 = vmatprep.subr.mxu0 0.0
    %1659 = vmatpush1.msra.mxu0 0.0
    %1660 = vmatprep.subr.mxu0 0.0
    %1661 = vmatpush1.msra.mxu0 0.0
    %1662 = vmatprep.subr.mxu0 0.0
    %1663 = vmatpush1.msra.mxu0 0.0
    %1664 = vmatprep.subr.mxu0 0.0
    %1665 = vmatpush1.msra.mxu0 0.0
    %1666 = vmatprep.subr.mxu0 0.0
    %1667 = vmatpush1.msra.mxu0 0.0
    %1668 = vmatprep.subr.mxu0 0.0
    %1669 = vmatpush1.msra.mxu0 0.0
    %1670 = vmatprep.subr.mxu0 0.0
    %1671 = vmatpush1.msra.mxu0 0.0
    %1672 = vmatprep.subr.mxu0 0.0
    %1673 = vmatpush1.msra.mxu0 0.0
    %1674 = vmatprep.mubr.f32.mxu0 0.0
    %1675 = vmatmul.mubr.f32.gmra.mrb[0].mxu0 %v1608
    %v1676 = vpop.f32.mrb[0].mxu0
    %v1677 = vadd.f32 0.0, %v1676
    %v1678 = vpop.f32.mrb[0].mxu0
    %1679 = vdwg.mxu0
    %1680 = vrot.lane.b32.xlu0 %v154, 56
    %v1681 = vpop.permute.xlu0 %1680
    %v1684 = vsel %vm162, %v1000, 0
    %1686 = vmatprep.subr.mxu0 0.0
    %1687 = vmatpush1.msra.mxu0 %v1681
    %1688 = vmatprep.subr.mxu0 0.0
    %1689 = vmatpush1.msra.mxu0 0.0
    %1690 = vmatprep.subr.mxu0 0.0
    %1691 = vmatpush1.msra.mxu0 0.0
    %1692 = vmatprep.subr.mxu0 0.0
    %1693 = vmatpush1.msra.mxu0 0.0
    %1694 = vmatprep.subr.mxu0 0.0
    %1695 = vmatpush1.msra.mxu0 0.0
    %1696 = vmatprep.subr.mxu0 0.0
    %1697 = vmatpush1.msra.mxu0 0.0
    %1698 = vmatprep.subr.mxu0 0.0
    %1699 = vmatpush1.msra.mxu0 0.0
    %1700 = vmatprep.subr.mxu0 0.0
    %1701 = vmatpush1.msra.mxu0 0.0
    %1702 = vmatprep.subr.mxu0 0.0
    %1703 = vmatpush1.msra.mxu0 0.0
    %1704 = vmatprep.subr.mxu0 0.0
    %1705 = vmatpush1.msra.mxu0 0.0
    %1706 = vmatprep.subr.mxu0 0.0
    %1707 = vmatpush1.msra.mxu0 0.0
    %1708 = vmatprep.subr.mxu0 0.0
    %1709 = vmatpush1.msra.mxu0 0.0
    %1710 = vmatprep.subr.mxu0 0.0
    %1711 = vmatpush1.msra.mxu0 0.0
    %1712 = vmatprep.subr.mxu0 0.0
    %1713 = vmatpush1.msra.mxu0 0.0
    %1714 = vmatprep.subr.mxu0 0.0
    %1715 = vmatpush1.msra.mxu0 0.0
    %1716 = vmatprep.subr.mxu0 0.0
    %1717 = vmatpush1.msra.mxu0 0.0
    %1718 = vmatprep.subr.mxu0 0.0
    %1719 = vmatpush1.msra.mxu0 0.0
    %1720 = vmatprep.subr.mxu0 0.0
    %1721 = vmatpush1.msra.mxu0 0.0
    %1722 = vmatprep.subr.mxu0 0.0
    %1723 = vmatpush1.msra.mxu0 0.0
    %1724 = vmatprep.subr.mxu0 0.0
    %1725 = vmatpush1.msra.mxu0 0.0
    %1726 = vmatprep.subr.mxu0 0.0
    %1727 = vmatpush1.msra.mxu0 0.0
    %1728 = vmatprep.subr.mxu0 0.0
    %1729 = vmatpush1.msra.mxu0 0.0
    %1730 = vmatprep.subr.mxu0 0.0
    %1731 = vmatpush1.msra.mxu0 0.0
    %1732 = vmatprep.subr.mxu0 0.0
    %1733 = vmatpush1.msra.mxu0 0.0
    %1734 = vmatprep.subr.mxu0 0.0
    %1735 = vmatpush1.msra.mxu0 0.0
    %1736 = vmatprep.subr.mxu0 0.0
    %1737 = vmatpush1.msra.mxu0 0.0
    %1738 = vmatprep.subr.mxu0 0.0
    %1739 = vmatpush1.msra.mxu0 0.0
    %1740 = vmatprep.subr.mxu0 0.0
    %1741 = vmatpush1.msra.mxu0 0.0
    %1742 = vmatprep.subr.mxu0 0.0
    %1743 = vmatpush1.msra.mxu0 0.0
    %1744 = vmatprep.subr.mxu0 0.0
    %1745 = vmatpush1.msra.mxu0 0.0
    %1746 = vmatprep.subr.mxu0 0.0
    %1747 = vmatpush1.msra.mxu0 0.0
    %1748 = vmatprep.subr.mxu0 0.0
    %1749 = vmatpush1.msra.mxu0 0.0
    %1750 = vmatprep.mubr.f32.mxu0 0.0
    %1751 = vmatmul.mubr.f32.gmra.mrb[0].mxu0 %v1684
    %v1752 = vpop.f32.mrb[0].mxu0
    %v1753 = vadd.f32 0.0, %v1752
    %v1754 = vpop.f32.mrb[0].mxu0
    %1755 = vdwg.mxu0
    %v1757 = vsel %vm162, %v1753, 0
    %1759 = vmatprep.subr.mxu0 0.0
    %1760 = vmatpush1.msra.mxu0 %v1156
    %1761 = vmatprep.subr.mxu0 0.0
    %1762 = vmatpush1.msra.mxu0 0.0
    %1763 = vmatprep.subr.mxu0 0.0
    %1764 = vmatpush1.msra.mxu0 0.0
    %1765 = vmatprep.subr.mxu0 0.0
    %1766 = vmatpush1.msra.mxu0 0.0
    %1767 = vmatprep.subr.mxu0 0.0
    %1768 = vmatpush1.msra.mxu0 0.0
    %1769 = vmatprep.subr.mxu0 0.0
    %1770 = vmatpush1.msra.mxu0 0.0
    %1771 = vmatprep.subr.mxu0 0.0
    %1772 = vmatpush1.msra.mxu0 0.0
    %1773 = vmatprep.subr.mxu0 0.0
    %1774 = vmatpush1.msra.mxu0 0.0
    %1775 = vmatprep.subr.mxu0 0.0
    %1776 = vmatpush1.msra.mxu0 0.0
    %1777 = vmatprep.subr.mxu0 0.0
    %1778 = vmatpush1.msra.mxu0 0.0
    %1779 = vmatprep.subr.mxu0 0.0
    %1780 = vmatpush1.msra.mxu0 0.0
    %1781 = vmatprep.subr.mxu0 0.0
    %1782 = vmatpush1.msra.mxu0 0.0
    %1783 = vmatprep.subr.mxu0 0.0
    %1784 = vmatpush1.msra.mxu0 0.0
    %1785 = vmatprep.subr.mxu0 0.0
    %1786 = vmatpush1.msra.mxu0 0.0
    %1787 = vmatprep.subr.mxu0 0.0
    %1788 = vmatpush1.msra.mxu0 0.0
    %1789 = vmatprep.subr.mxu0 0.0
    %1790 = vmatpush1.msra.mxu0 0.0
    %1791 = vmatprep.subr.mxu0 0.0
    %1792 = vmatpush1.msra.mxu0 0.0
    %1793 = vmatprep.subr.mxu0 0.0
    %1794 = vmatpush1.msra.mxu0 0.0
    %1795 = vmatprep.subr.mxu0 0.0
    %1796 = vmatpush1.msra.mxu0 0.0
    %1797 = vmatprep.subr.mxu0 0.0
    %1798 = vmatpush1.msra.mxu0 0.0
    %1799 = vmatprep.subr.mxu0 0.0
    %1800 = vmatpush1.msra.mxu0 0.0
    %1801 = vmatprep.subr.mxu0 0.0
    %1802 = vmatpush1.msra.mxu0 0.0
    %1803 = vmatprep.subr.mxu0 0.0
    %1804 = vmatpush1.msra.mxu0 0.0
    %1805 = vmatprep.subr.mxu0 0.0
    %1806 = vmatpush1.msra.mxu0 0.0
    %1807 = vmatprep.subr.mxu0 0.0
    %1808 = vmatpush1.msra.mxu0 0.0
    %1809 = vmatprep.subr.mxu0 0.0
    %1810 = vmatpush1.msra.mxu0 0.0
    %1811 = vmatprep.subr.mxu0 0.0
    %1812 = vmatpush1.msra.mxu0 0.0
    %1813 = vmatprep.subr.mxu0 0.0
    %1814 = vmatpush1.msra.mxu0 0.0
    %1815 = vmatprep.subr.mxu0 0.0
    %1816 = vmatpush1.msra.mxu0 0.0
    %1817 = vmatprep.subr.mxu0 0.0
    %1818 = vmatpush1.msra.mxu0 0.0
    %1819 = vmatprep.subr.mxu0 0.0
    %1820 = vmatpush1.msra.mxu0 0.0
    %1821 = vmatprep.subr.mxu0 0.0
    %1822 = vmatpush1.msra.mxu0 0.0
    %1823 = vmatprep.mubr.f32.mxu0 0.0
    %1824 = vmatmul.mubr.f32.gmra.mrb[0].mxu0 %v1757
    %v1825 = vpop.f32.mrb[0].mxu0
    %v1826 = vadd.f32 0.0, %v1825
    %v1827 = vpop.f32.mrb[0].mxu0
    %1828 = vdwg.mxu0
    %1829 = vrot.lane.b32.xlu0 %v154, 48
    %v1830 = vpop.permute.xlu0 %1829
    %v1833 = vsel %vm162, %v1001, 0
    %1835 = vmatprep.subr.mxu0 0.0
    %1836 = vmatpush1.msra.mxu0 %v1830
    %1837 = vmatprep.subr.mxu0 0.0
    %1838 = vmatpush1.msra.mxu0 0.0
    %1839 = vmatprep.subr.mxu0 0.0
    %1840 = vmatpush1.msra.mxu0 0.0
    %1841 = vmatprep.subr.mxu0 0.0
    %1842 = vmatpush1.msra.mxu0 0.0
    %1843 = vmatprep.subr.mxu0 0.0
    %1844 = vmatpush1.msra.mxu0 0.0
    %1845 = vmatprep.subr.mxu0 0.0
    %1846 = vmatpush1.msra.mxu0 0.0
    %1847 = vmatprep.subr.mxu0 0.0
    %1848 = vmatpush1.msra.mxu0 0.0
    %1849 = vmatprep.subr.mxu0 0.0
    %1850 = vmatpush1.msra.mxu0 0.0
    %1851 = vmatprep.subr.mxu0 0.0
    %1852 = vmatpush1.msra.mxu0 0.0
    %1853 = vmatprep.subr.mxu0 0.0
    %1854 = vmatpush1.msra.mxu0 0.0
    %1855 = vmatprep.subr.mxu0 0.0
    %1856 = vmatpush1.msra.mxu0 0.0
    %1857 = vmatprep.subr.mxu0 0.0
    %1858 = vmatpush1.msra.mxu0 0.0
    %1859 = vmatprep.subr.mxu0 0.0
    %1860 = vmatpush1.msra.mxu0 0.0
    %1861 = vmatprep.subr.mxu0 0.0
    %1862 = vmatpush1.msra.mxu0 0.0
    %1863 = vmatprep.subr.mxu0 0.0
    %1864 = vmatpush1.msra.mxu0 0.0
    %1865 = vmatprep.subr.mxu0 0.0
    %1866 = vmatpush1.msra.mxu0 0.0
    %1867 = vmatprep.subr.mxu0 0.0
    %1868 = vmatpush1.msra.mxu0 0.0
    %1869 = vmatprep.subr.mxu0 0.0
    %1870 = vmatpush1.msra.mxu0 0.0
    %1871 = vmatprep.subr.mxu0 0.0
    %1872 = vmatpush1.msra.mxu0 0.0
    %1873 = vmatprep.subr.mxu0 0.0
    %1874 = vmatpush1.msra.mxu0 0.0
    %1875 = vmatprep.subr.mxu0 0.0
    %1876 = vmatpush1.msra.mxu0 0.0
    %1877 = vmatprep.subr.mxu0 0.0
    %1878 = vmatpush1.msra.mxu0 0.0
    %1879 = vmatprep.subr.mxu0 0.0
    %1880 = vmatpush1.msra.mxu0 0.0
    %1881 = vmatprep.subr.mxu0 0.0
    %1882 = vmatpush1.msra.mxu0 0.0
    %1883 = vmatprep.subr.mxu0 0.0
    %1884 = vmatpush1.msra.mxu0 0.0
    %1885 = vmatprep.subr.mxu0 0.0
    %1886 = vmatpush1.msra.mxu0 0.0
    %1887 = vmatprep.subr.mxu0 0.0
    %1888 = vmatpush1.msra.mxu0 0.0
    %1889 = vmatprep.subr.mxu0 0.0
    %1890 = vmatpush1.msra.mxu0 0.0
    %1891 = vmatprep.subr.mxu0 0.0
    %1892 = vmatpush1.msra.mxu0 0.0
    %1893 = vmatprep.subr.mxu0 0.0
    %1894 = vmatpush1.msra.mxu0 0.0
    %1895 = vmatprep.subr.mxu0 0.0
    %1896 = vmatpush1.msra.mxu0 0.0
    %1897 = vmatprep.subr.mxu0 0.0
    %1898 = vmatpush1.msra.mxu0 0.0
    %1899 = vmatprep.mubr.f32.mxu0 0.0
    %1900 = vmatmul.mubr.f32.gmra.mrb[0].mxu0 %v1833
    %v1901 = vpop.f32.mrb[0].mxu0
    %v1902 = vadd.f32 0.0, %v1901
    %v1903 = vpop.f32.mrb[0].mxu0
    %1904 = vdwg.mxu0
    %1905 = vrot.lane.b32.xlu0 %v154, 40
    %v1906 = vpop.permute.xlu0 %1905
    %v1909 = vsel %vm162, %v1002, 0
    %1911 = vmatprep.subr.mxu0 0.0
    %1912 = vmatpush1.msra.mxu0 %v1906
    %1913 = vmatprep.subr.mxu0 0.0
    %1914 = vmatpush1.msra.mxu0 0.0
    %1915 = vmatprep.subr.mxu0 0.0
    %1916 = vmatpush1.msra.mxu0 0.0
    %1917 = vmatprep.subr.mxu0 0.0
    %1918 = vmatpush1.msra.mxu0 0.0
    %1919 = vmatprep.subr.mxu0 0.0
    %1920 = vmatpush1.msra.mxu0 0.0
    %1921 = vmatprep.subr.mxu0 0.0
    %1922 = vmatpush1.msra.mxu0 0.0
    %1923 = vmatprep.subr.mxu0 0.0
    %1924 = vmatpush1.msra.mxu0 0.0
    %1925 = vmatprep.subr.mxu0 0.0
    %1926 = vmatpush1.msra.mxu0 0.0
    %1927 = vmatprep.subr.mxu0 0.0
    %1928 = vmatpush1.msra.mxu0 0.0
    %1929 = vmatprep.subr.mxu0 0.0
    %1930 = vmatpush1.msra.mxu0 0.0
    %1931 = vmatprep.subr.mxu0 0.0
    %1932 = vmatpush1.msra.mxu0 0.0
    %1933 = vmatprep.subr.mxu0 0.0
    %1934 = vmatpush1.msra.mxu0 0.0
    %1935 = vmatprep.subr.mxu0 0.0
    %1936 = vmatpush1.msra.mxu0 0.0
    %1937 = vmatprep.subr.mxu0 0.0
    %1938 = vmatpush1.msra.mxu0 0.0
    %1939 = vmatprep.subr.mxu0 0.0
    %1940 = vmatpush1.msra.mxu0 0.0
    %1941 = vmatprep.subr.mxu0 0.0
    %1942 = vmatpush1.msra.mxu0 0.0
    %1943 = vmatprep.subr.mxu0 0.0
    %1944 = vmatpush1.msra.mxu0 0.0
    %1945 = vmatprep.subr.mxu0 0.0
    %1946 = vmatpush1.msra.mxu0 0.0
    %1947 = vmatprep.subr.mxu0 0.0
    %1948 = vmatpush1.msra.mxu0 0.0
    %1949 = vmatprep.subr.mxu0 0.0
    %1950 = vmatpush1.msra.mxu0 0.0
    %1951 = vmatprep.subr.mxu0 0.0
    %1952 = vmatpush1.msra.mxu0 0.0
    %1953 = vmatprep.subr.mxu0 0.0
    %1954 = vmatpush1.msra.mxu0 0.0
    %1955 = vmatprep.subr.mxu0 0.0
    %1956 = vmatpush1.msra.mxu0 0.0
    %1957 = vmatprep.subr.mxu0 0.0
    %1958 = vmatpush1.msra.mxu0 0.0
    %1959 = vmatprep.subr.mxu0 0.0
    %1960 = vmatpush1.msra.mxu0 0.0
    %1961 = vmatprep.subr.mxu0 0.0
    %1962 = vmatpush1.msra.mxu0 0.0
    %1963 = vmatprep.subr.mxu0 0.0
    %1964 = vmatpush1.msra.mxu0 0.0
    %1965 = vmatprep.subr.mxu0 0.0
    %1966 = vmatpush1.msra.mxu0 0.0
    %1967 = vmatprep.subr.mxu0 0.0
    %1968 = vmatpush1.msra.mxu0 0.0
    %1969 = vmatprep.subr.mxu0 0.0
    %1970 = vmatpush1.msra.mxu0 0.0
    %1971 = vmatprep.subr.mxu0 0.0
    %1972 = vmatpush1.msra.mxu0 0.0
    %1973 = vmatprep.subr.mxu0 0.0
    %1974 = vmatpush1.msra.mxu0 0.0
    %1975 = vmatprep.mubr.f32.mxu0 0.0
    %1976 = vmatmul.mubr.f32.gmra.mrb[0].mxu0 %v1909
    %v1977 = vpop.f32.mrb[0].mxu0
    %v1978 = vadd.f32 0.0, %v1977
    %v1979 = vpop.f32.mrb[0].mxu0
    %1980 = vdwg.mxu0
    %v1982 = vsel %vm162, %v1978, 0
    %1984 = vmatprep.subr.mxu0 0.0
    %1985 = vmatpush1.msra.mxu0 %v1383
    %1986 = vmatprep.subr.mxu0 0.0
    %1987 = vmatpush1.msra.mxu0 0.0
    %1988 = vmatprep.subr.mxu0 0.0
    %1989 = vmatpush1.msra.mxu0 0.0
    %1990 = vmatprep.subr.mxu0 0.0
    %1991 = vmatpush1.msra.mxu0 0.0
    %1992 = vmatprep.subr.mxu0 0.0
    %1993 = vmatpush1.msra.mxu0 0.0
    %1994 = vmatprep.subr.mxu0 0.0
    %1995 = vmatpush1.msra.mxu0 0.0
    %1996 = vmatprep.subr.mxu0 0.0
    %1997 = vmatpush1.msra.mxu0 0.0
    %1998 = vmatprep.subr.mxu0 0.0
    %1999 = vmatpush1.msra.mxu0 0.0
    %2000 = vmatprep.subr.mxu0 0.0
    %2001 = vmatpush1.msra.mxu0 0.0
    %2002 = vmatprep.subr.mxu0 0.0
    %2003 = vmatpush1.msra.mxu0 0.0
    %2004 = vmatprep.subr.mxu0 0.0
    %2005 = vmatpush1.msra.mxu0 0.0
    %2006 = vmatprep.subr.mxu0 0.0
    %2007 = vmatpush1.msra.mxu0 0.0
    %2008 = vmatprep.subr.mxu0 0.0
    %2009 = vmatpush1.msra.mxu0 0.0
    %2010 = vmatprep.subr.mxu0 0.0
    %2011 = vmatpush1.msra.mxu0 0.0
    %2012 = vmatprep.subr.mxu0 0.0
    %2013 = vmatpush1.msra.mxu0 0.0
    %2014 = vmatprep.subr.mxu0 0.0
    %2015 = vmatpush1.msra.mxu0 0.0
    %2016 = vmatprep.subr.mxu0 0.0
    %2017 = vmatpush1.msra.mxu0 0.0
    %2018 = vmatprep.subr.mxu0 0.0
    %2019 = vmatpush1.msra.mxu0 0.0
    %2020 = vmatprep.subr.mxu0 0.0
    %2021 = vmatpush1.msra.mxu0 0.0
    %2022 = vmatprep.subr.mxu0 0.0
    %2023 = vmatpush1.msra.mxu0 0.0
    %2024 = vmatprep.subr.mxu0 0.0
    %2025 = vmatpush1.msra.mxu0 0.0
    %2026 = vmatprep.subr.mxu0 0.0
    %2027 = vmatpush1.msra.mxu0 0.0
    %2028 = vmatprep.subr.mxu0 0.0
    %2029 = vmatpush1.msra.mxu0 0.0
    %2030 = vmatprep.subr.mxu0 0.0
    %2031 = vmatpush1.msra.mxu0 0.0
    %2032 = vmatprep.subr.mxu0 0.0
    %2033 = vmatpush1.msra.mxu0 0.0
    %2034 = vmatprep.subr.mxu0 0.0
    %2035 = vmatpush1.msra.mxu0 0.0
    %2036 = vmatprep.subr.mxu0 0.0
    %2037 = vmatpush1.msra.mxu0 0.0
    %2038 = vmatprep.subr.mxu0 0.0
    %2039 = vmatpush1.msra.mxu0 0.0
    %2040 = vmatprep.subr.mxu0 0.0
    %2041 = vmatpush1.msra.mxu0 0.0
    %2042 = vmatprep.subr.mxu0 0.0
    %2043 = vmatpush1.msra.mxu0 0.0
    %2044 = vmatprep.subr.mxu0 0.0
    %2045 = vmatpush1.msra.mxu0 0.0
    %2046 = vmatprep.subr.mxu0 0.0
    %2047 = vmatpush1.msra.mxu0 0.0
    %2048 = vmatprep.mubr.f32.mxu0 0.0
    %2049 = vmatmul.mubr.f32.gmra.mrb[0].mxu0 %v1982
    %v2050 = vpop.f32.mrb[0].mxu0
    %v2051 = vadd.f32 0.0, %v2050
    %v2052 = vpop.f32.mrb[0].mxu0
    %2053 = vdwg.mxu0
    %v2055 = vsel %vm162, %v1677, 0
    %2057 = vmatprep.subr.mxu0 0.0
    %2058 = vmatpush1.msra.mxu0 %v1079
    %2059 = vmatprep.subr.mxu0 0.0
    %2060 = vmatpush1.msra.mxu0 0.0
    %2061 = vmatprep.subr.mxu0 0.0
    %2062 = vmatpush1.msra.mxu0 0.0
    %2063 = vmatprep.subr.mxu0 0.0
    %2064 = vmatpush1.msra.mxu0 0.0
    %2065 = vmatprep.subr.mxu0 0.0
    %2066 = vmatpush1.msra.mxu0 0.0
    %2067 = vmatprep.subr.mxu0 0.0
    %2068 = vmatpush1.msra.mxu0 0.0
    %2069 = vmatprep.subr.mxu0 0.0
    %2070 = vmatpush1.msra.mxu0 0.0
    %2071 = vmatprep.subr.mxu0 0.0
    %2072 = vmatpush1.msra.mxu0 0.0
    %2073 = vmatprep.subr.mxu0 0.0
    %2074 = vmatpush1.msra.mxu0 0.0
    %2075 = vmatprep.subr.mxu0 0.0
    %2076 = vmatpush1.msra.mxu0 0.0
    %2077 = vmatprep.subr.mxu0 0.0
    %2078 = vmatpush1.msra.mxu0 0.0
    %2079 = vmatprep.subr.mxu0 0.0
    %2080 = vmatpush1.msra.mxu0 0.0
    %2081 = vmatprep.subr.mxu0 0.0
    %2082 = vmatpush1.msra.mxu0 0.0
    %2083 = vmatprep.subr.mxu0 0.0
    %2084 = vmatpush1.msra.mxu0 0.0
    %2085 = vmatprep.subr.mxu0 0.0
    %2086 = vmatpush1.msra.mxu0 0.0
    %2087 = vmatprep.subr.mxu0 0.0
    %2088 = vmatpush1.msra.mxu0 0.0
    %2089 = vmatprep.subr.mxu0 0.0
    %2090 = vmatpush1.msra.mxu0 0.0
    %2091 = vmatprep.subr.mxu0 0.0
    %2092 = vmatpush1.msra.mxu0 0.0
    %2093 = vmatprep.subr.mxu0 0.0
    %2094 = vmatpush1.msra.mxu0 0.0
    %2095 = vmatprep.subr.mxu0 0.0
    %2096 = vmatpush1.msra.mxu0 0.0
    %2097 = vmatprep.subr.mxu0 0.0
    %2098 = vmatpush1.msra.mxu0 0.0
    %2099 = vmatprep.subr.mxu0 0.0
    %2100 = vmatpush1.msra.mxu0 0.0
    %2101 = vmatprep.subr.mxu0 0.0
    %2102 = vmatpush1.msra.mxu0 0.0
    %2103 = vmatprep.subr.mxu0 0.0
    %2104 = vmatpush1.msra.mxu0 0.0
    %2105 = vmatprep.subr.mxu0 0.0
    %2106 = vmatpush1.msra.mxu0 0.0
    %2107 = vmatprep.subr.mxu0 0.0
    %2108 = vmatpush1.msra.mxu0 0.0
    %2109 = vmatprep.subr.mxu0 0.0
    %2110 = vmatpush1.msra.mxu0 0.0
    %2111 = vmatprep.subr.mxu0 0.0
    %2112 = vmatpush1.msra.mxu0 0.0
    %2113 = vmatprep.subr.mxu0 0.0
    %2114 = vmatpush1.msra.mxu0 0.0
    %2115 = vmatprep.subr.mxu0 0.0
    %2116 = vmatpush1.msra.mxu0 0.0
    %2117 = vmatprep.subr.mxu0 0.0
    %2118 = vmatpush1.msra.mxu0 0.0
    %2119 = vmatprep.subr.mxu0 0.0
    %2120 = vmatpush1.msra.mxu0 0.0
    %2121 = vmatprep.mubr.f32.mxu0 0.0
    %2122 = vmatmul.mubr.f32.gmra.mrb[0].mxu0 %v2055
    %v2123 = vpop.f32.mrb[0].mxu0
    %v2124 = vadd.f32 %v1826, %v2123
    %v2125 = vpop.f32.mrb[0].mxu0
    %2126 = vdwg.mxu0
    %v2128 = vsel %vm162, %v1902, 0
    %2130 = vmatprep.subr.mxu0 0.0
    %2131 = vmatpush1.msra.mxu0 %v1306
    %2132 = vmatprep.subr.mxu0 0.0
    %2133 = vmatpush1.msra.mxu0 0.0
    %2134 = vmatprep.subr.mxu0 0.0
    %2135 = vmatpush1.msra.mxu0 0.0
    %2136 = vmatprep.subr.mxu0 0.0
    %2137 = vmatpush1.msra.mxu0 0.0
    %2138 = vmatprep.subr.mxu0 0.0
    %2139 = vmatpush1.msra.mxu0 0.0
    %2140 = vmatprep.subr.mxu0 0.0
    %2141 = vmatpush1.msra.mxu0 0.0
    %2142 = vmatprep.subr.mxu0 0.0
    %2143 = vmatpush1.msra.mxu0 0.0
    %2144 = vmatprep.subr.mxu0 0.0
    %2145 = vmatpush1.msra.mxu0 0.0
    %2146 = vmatprep.subr.mxu0 0.0
    %2147 = vmatpush1.msra.mxu0 0.0
    %2148 = vmatprep.subr.mxu0 0.0
    %2149 = vmatpush1.msra.mxu0 0.0
    %2150 = vmatprep.subr.mxu0 0.0
    %2151 = vmatpush1.msra.mxu0 0.0
    %2152 = vmatprep.subr.mxu0 0.0
    %2153 = vmatpush1.msra.mxu0 0.0
    %2154 = vmatprep.subr.mxu0 0.0
    %2155 = vmatpush1.msra.mxu0 0.0
    %2156 = vmatprep.subr.mxu0 0.0
    %2157 = vmatpush1.msra.mxu0 0.0
    %2158 = vmatprep.subr.mxu0 0.0
    %2159 = vmatpush1.msra.mxu0 0.0
    %2160 = vmatprep.subr.mxu0 0.0
    %2161 = vmatpush1.msra.mxu0 0.0
    %2162 = vmatprep.subr.mxu0 0.0
    %2163 = vmatpush1.msra.mxu0 0.0
    %2164 = vmatprep.subr.mxu0 0.0
    %2165 = vmatpush1.msra.mxu0 0.0
    %2166 = vmatprep.subr.mxu0 0.0
    %2167 = vmatpush1.msra.mxu0 0.0
    %2168 = vmatprep.subr.mxu0 0.0
    %2169 = vmatpush1.msra.mxu0 0.0
    %2170 = vmatprep.subr.mxu0 0.0
    %2171 = vmatpush1.msra.mxu0 0.0
    %2172 = vmatprep.subr.mxu0 0.0
    %2173 = vmatpush1.msra.mxu0 0.0
    %2174 = vmatprep.subr.mxu0 0.0
    %2175 = vmatpush1.msra.mxu0 0.0
    %2176 = vmatprep.subr.mxu0 0.0
    %2177 = vmatpush1.msra.mxu0 0.0
    %2178 = vmatprep.subr.mxu0 0.0
    %2179 = vmatpush1.msra.mxu0 0.0
    %2180 = vmatprep.subr.mxu0 0.0
    %2181 = vmatpush1.msra.mxu0 0.0
    %2182 = vmatprep.subr.mxu0 0.0
    %2183 = vmatpush1.msra.mxu0 0.0
    %2184 = vmatprep.subr.mxu0 0.0
    %2185 = vmatpush1.msra.mxu0 0.0
    %2186 = vmatprep.subr.mxu0 0.0
    %2187 = vmatpush1.msra.mxu0 0.0
    %2188 = vmatprep.subr.mxu0 0.0
    %2189 = vmatpush1.msra.mxu0 0.0
    %2190 = vmatprep.subr.mxu0 0.0
    %2191 = vmatpush1.msra.mxu0 0.0
    %2192 = vmatprep.subr.mxu0 0.0
    %2193 = vmatpush1.msra.mxu0 0.0
    %2194 = vmatprep.mubr.f32.mxu0 0.0
    %2195 = vmatmul.mubr.f32.gmra.mrb[0].mxu0 %v2128
    %v2196 = vpop.f32.mrb[0].mxu0
    %v2197 = vadd.f32 %v2051, %v2196
    %v2198 = vpop.f32.mrb[0].mxu0
    %2199 = vdwg.mxu0
    %v2200 = vadd.f32 %v2124, %v2197
    %v2201 = vld [vmem:[%s4] sm:$0x1]
    %v2203 = vlaneseq
    %v2204 = vshrl.u32 %v2203, 7
    %v2205 = vsub.s32 0, %v2204
    %v2206 = vrot.slane %v2201, %v2205
    %v2208 = vadd.f32 %v1603, %v2206
    %v2209 = vadd.f32 %v2200, %v2206
    %2210 = vst.msk [vmem:[#allocation8] sm:$0xff] %vm75, %v2208
    %2211 = vst.msk [vmem:[#allocation8 + $0x8] sm:$0xff] %vm75, %v2209
    // Predicated region
    $region34: #{attention_forward.1} parent=1 // pred_check
      _
    $region35: #{attention_forward.1} parent=1 // pred_check_branch
      %2213 = sbr.rel (0) target = $region37
    $region36: #{attention_forward.1} parent=1 // pred_region
      %s2215 = ssub.s32 256, 256
      %2216 = vsyncadd [#allocation4], %s2215
      %s2217 = sshll.u32 [#allocation8], 4
      %s2218 = int_to_ptr.vmem [resolvable:$true] %s2217
      %2223 = dma.vmem_to_hbm [thread:$0]  %s2218, 256, %s5, [#allocation4], 128, 128, 8
    $region37: #{attention_forward.1} parent=1 // pred_fallthru
      _
    // Predicated region
    $region38: #{attention_forward.1} parent=1 // pred_check
      _
    $region39: #{attention_forward.1} parent=1 // pred_check_branch
      %2225 = sbr.rel (0) target = $region41
    $region40: #{attention_forward.1} parent=1 // pred_region
      %2226 = dma.done [#allocation4], 256
    $region41: #{attention_forward.1} parent=1 // pred_fallthru
      _
    %2227 = vsyncpa [#allocation3], 1
    %2228 = vsyncpa [#allocation6], 1
    %2229 = vsyncpa [#allocation4], 1

</llo_original>
